<compile_context>
chip_gen: v7x
topology: tpu7x:2x2x1
jax: 0.10.0
libtpu: 0.0.40
codegen_flags: <defaults>
</compile_context>

<pallas_src>
import numpy as np
import jax
import jax.numpy as jnp
from jax.experimental import pallas as pl
from jax.experimental.pallas import tpu as pltpu

SLOPE_RATIO = 0.1


def _round_up(x, m):
    return (x + m - 1) // m * m


def _pick_tile(n, target):
    """Largest multiple of 128 that divides n and is <= max(128, target)."""
    t = min(n, max(128, (target // 128) * 128))
    while n % t:
        t -= 128
    return t


def _vmem_cap_bytes():
    """Generation-aware cap for vmem_limit_bytes."""
    phys = None
    try:
        info = pltpu.get_tpu_info()
        phys = getattr(info, "vmem_capacity_bytes", None)
    except Exception:
        phys = None
    if phys is None:
        return 48 * 2**20                      # safe everywhere (v7x = 64 MiB/core)
    if phys <= 64 * 2**20:                      # v7x-class
        return 48 * 2**20
    return 100 * 2**20                          # v5e / v6e (128 MiB physical)


def attention_aggregate(feats, w, b, a_vec, cnt, *, tm_target=512, tk_target=2048):
    """Densified AttentionAggregator forward.

    feats : [N, in_dim] f32, N a multiple of 128 (padded rows zero)
    w     : [in_dim, out_dim] f32  (nn.Linear weight, already transposed)
    b     : [1, out_dim] f32
    a_vec : [2*out_dim, 1] f32     (torch layout: a1 = a[:out_dim], a2 = a[out_dim:])
    cnt   : [N, N] int8 duplicate-count adjacency (row = edge source)
    returns [N, out_dim] f32 row-normalized aggregation (padded rows are garbage)
    """
    feats = jnp.asarray(feats, jnp.float32)
    w = jnp.asarray(w, jnp.float32)
    b = jnp.asarray(b, jnp.float32).reshape(1, -1)
    a_flat = jnp.asarray(a_vec, jnp.float32).reshape(-1)
    cnt = jnp.asarray(cnt, jnp.int8)

    n, in_dim = feats.shape
    out_dim = w.shape[1]
    assert n % 128 == 0 and cnt.shape == (n, n)

    d_pad = _round_up(out_dim + 1, 128)          # columns: [ h | ones | zeros... ]
    col_ones = out_dim
    a1 = a_flat[:out_dim].reshape(out_dim, 1)
    a2 = a_flat[out_dim:].reshape(out_dim, 1)

    # ---- hoisted folded linear (plain XLA, O(N*in_dim*out_dim)) --------------
    h = feats @ w + b                                            # [n, out_dim] f32
    h_ext = jnp.zeros((n, d_pad), jnp.float32).at[:, :out_dim].set(h)
    h_ext = h_ext.at[:, col_ones].set(1.0)                       # fused row-sum col
    h_ext = h_ext.astype(jnp.bfloat16)                           # bf16 MXU operand
    s_src = (h @ a1).astype(jnp.float32)                         # [n, 1]
    s_dst = (h @ a2).reshape(1, n).astype(jnp.float32)           # [1, n]

    # ---- tiling & VMEM budget --------------------------------------------------
    # NOTE(v7x): rows are sharded across both TensorCores; keep the row-block
    # count even for balance and size tiles for the per-core 64 MiB budget.
    tm = _pick_tile(n, tm_target)
    tk = _pick_tile(n, tk_target)
    cap = _vmem_cap_bytes()

    def _estimate(tm_, tk_):
        return (3 * tm_ * tk_                    # cnt int8 tiles (buffered)
                + 2 * tk_ * d_pad * 2            # h bf16 tiles
                + 2 * tm_ * 128 * 4              # s_src tiles (lane-padded)
                + 2 * 8 * tk_ * 4                # s_dst tiles (sublane-padded)
                + 2 * tm_ * d_pad * 4            # output tiles (f32)
                + 4 * tm_ * tk_ * 4)             # logits/e/m/convert temporaries

    while _estimate(tm, tk) * 3 // 2 > cap and tk > 128:
        tk = _pick_tile(n, tk - 128)
    vmem_limit = int(min(max(_estimate(tm, tk) * 3 // 2, 8 * 2**20), cap))

    grid = (n // tm, n // tk)

    # ---- kernel ----------------------------------------------------------------
    def kernel(ssrc_ref, sdst_ref, h_ref, cnt_ref, out_ref):
        k = pl.program_id(1)

        logits = ssrc_ref[...] + sdst_ref[...]                       # [tm, tk]
        e = jnp.exp(jnp.maximum(logits, SLOPE_RATIO * logits))       # leaky_relu + exp
        m = (cnt_ref[...].astype(jnp.float32) * e).astype(jnp.bfloat16)
        partial = jnp.dot(m, h_ref[...], preferred_element_type=jnp.float32)

        @pl.when(k == 0)
        def _():                                   # first partial written directly
            out_ref[...] = partial

        @pl.when(k > 0)
        def _():
            out_ref[...] += partial

        @pl.when(k == pl.num_programs(1) - 1)
        def _():
            acc = out_ref[...]
            row_sum = acc[:, col_ones:col_ones + 1]          # fused M @ ones
            out_ref[...] = acc * pl.reciprocal(row_sum, approx=True)

    out = pl.pallas_call(
        kernel,
        out_shape=jax.ShapeDtypeStruct((n, d_pad), jnp.float32),
        grid_spec=pltpu.PrefetchScalarGridSpec(
            num_scalar_prefetch=0,
            grid=grid,
            in_specs=[
                pl.BlockSpec((tm, 1), lambda i, k: (i, 0)),        # s_src
                pl.BlockSpec((1, tk), lambda i, k: (0, k)),        # s_dst
                pl.BlockSpec((tk, d_pad), lambda i, k: (k, 0)),    # h (bf16, streamed)
                pl.BlockSpec((tm, tk), lambda i, k: (i, k)),       # cnt (int8, streamed)
            ],
            out_specs=pl.BlockSpec((tm, d_pad), lambda i, k: (i, 0)),
        ),
        compiler_params=pltpu.CompilerParams(
            dimension_semantics=("parallel", "arbitrary"),
            vmem_limit_bytes=vmem_limit,
        ),
    )(s_src, s_dst, h_ext, cnt)
    return out[:, :out_dim]


if __name__ == "__main__":
    # ---- deterministic synthetic setup (small GNN batch) ---------------------
    node_num, in_dim, out_dim = 300, 16, 8
    nodes = list(range(0, node_num, 2))            # batch of 150 nodes

    key = jax.random.PRNGKey(0)
    k_feat, k_adj, k_w, k_a = jax.random.split(key, 4)

    feat_table = np.asarray(
        jax.random.normal(k_feat, (node_num, in_dim), dtype=jnp.float32))
    adj = np.asarray(
        jax.random.bernoulli(k_adj, 0.10, (node_num, node_num))).astype(np.int32)

    # Parameters (deterministic init mimicking nn.Linear / kaiming_normal_).
    w_t = np.asarray(jax.random.normal(k_w, (in_dim, out_dim),
                                       dtype=jnp.float32)) / np.sqrt(in_dim)
    b = np.zeros((1, out_dim), dtype=np.float32)
    a = np.asarray(jax.random.normal(k_a, (2 * out_dim, 1),
                                     dtype=jnp.float32)) * np.sqrt(2.0 / (2 * out_dim))

    # ---- glue: edge construction exactly as the PyTorch forward ---------------
    # TODO(synk): sparse edge extraction / unique-node remapping is host-side
    # numpy index plumbing (as in the reference module); it stays outside Pallas.
    node_pku = np.array(nodes)
    rows, cols = np.nonzero(adj[nodes, :])
    edges = np.stack([rows, cols], axis=1).astype(np.int64)
    edges[:, 0] = node_pku[edges[:, 0]]
    unique_nodes_list = np.unique(np.hstack((np.unique(edges), node_pku)))
    batch_node_num = len(unique_nodes_list)
    unique_nodes_dict = np.zeros(node_num, dtype=np.int32)
    unique_nodes_dict[unique_nodes_list] = np.arange(batch_node_num)
    edges[:, 0] = unique_nodes_dict[edges[:, 0]]
    edges[:, 1] = unique_nodes_dict[edges[:, 1]]
    self_edges = np.stack([unique_nodes_dict[node_pku],
                           unique_nodes_dict[node_pku]], axis=1)
    edges = np.vstack([edges, self_edges])

    # Pad node count to a multiple of 128 (TPU lane width).  Padded rows get a
    # self count so their row-sum is nonzero (their output is discarded).
    n_pad = _round_up(batch_node_num, 128)
    cnt = np.zeros((n_pad, n_pad), dtype=np.int32)
    np.add.at(cnt, (edges[:, 0], edges[:, 1]), 1)   # duplicates sum, like sparse.mm
    pad_idx = np.arange(batch_node_num, n_pad)
    cnt[pad_idx, pad_idx] = 1
    cnt = cnt.astype(np.int8)

    feats_unique = np.zeros((n_pad, in_dim), dtype=np.float32)
    feats_unique[:batch_node_num] = feat_table[unique_nodes_list]

    # ---- run kernel ------------------------------------------------------------
    out_all = attention_aggregate(feats_unique, w_t, b, a, cnt)
    out_all = np.asarray(jax.block_until_ready(out_all))
    output_emb = out_all[unique_nodes_dict[node_pku]]   # [len(nodes), out_dim]

    # ---- pure-numpy reference check --------------------------------------------
    h_ref = feats_unique[:batch_node_num] @ w_t + b
    logits = h_ref @ a[:out_dim] + (h_ref @ a[out_dim:]).T
    e_ref = np.exp(np.where(logits >= 0, logits, SLOPE_RATIO * logits))
    m_ref = cnt[:batch_node_num, :batch_node_num].astype(np.float32) * e_ref
    out_ref = (m_ref @ h_ref) / m_ref.sum(axis=1, keepdims=True)
    ref = out_ref[unique_nodes_dict[node_pku]]

    # bf16 MXU operands + approx reciprocal => tolerance ~1% (reference is f32).
    np.testing.assert_allclose(output_emb, ref, rtol=2e-2, atol=5e-3)
    print("KERNEL_OK")
</pallas_src>

<mosaic_0001>
module attributes {stable_mosaic.version = 11 : i64} {
  func.func @kernel(%arg0: i32, %arg1: i32, %arg2: memref<384x1xf32, #tpu.memory_space<vmem>>, %arg3: memref<1x384xf32, #tpu.memory_space<vmem>>, %arg4: memref<384x128xbf16, #tpu.memory_space<vmem>>, %arg5: memref<384x384xi8, #tpu.memory_space<vmem>>, %arg6: memref<384x128xf32, #tpu.memory_space<vmem>>) attributes {dimension_semantics = [#tpu.dimension_semantics<parallel>, #tpu.dimension_semantics<arbitrary>], iteration_bounds = array<i64: 1, 1>, scalar_prefetch = 0 : i64, scratch_operands = 0 : i64, tpu.core_type = #tpu.core_type<tc>, window_params = [{transform_indices = @transform_0, window_bounds = array<i64: 384, 1>}, {transform_indices = @transform_1, window_bounds = array<i64: 1, 384>}, {transform_indices = @transform_2, window_bounds = array<i64: 384, 128>}, {transform_indices = @transform_3, window_bounds = array<i64: 384, 384>}, {transform_indices = @transform_4, window_bounds = array<i64: 384, 128>}]} {
    %c0 = arith.constant 0 : index
    %c0_0 = arith.constant 0 : index
    %0 = vector.load %arg2[%c0, %c0_0] : memref<384x1xf32, #tpu.memory_space<vmem>>, vector<384x1xf32>
    %c0_1 = arith.constant 0 : index
    %c0_2 = arith.constant 0 : index
    %1 = vector.load %arg3[%c0_1, %c0_2] : memref<1x384xf32, #tpu.memory_space<vmem>>, vector<1x384xf32>
    %2 = vector.broadcast %0 : vector<384x1xf32> to vector<384x384xf32>
    %3 = vector.broadcast %1 : vector<1x384xf32> to vector<384x384xf32>
    %4 = arith.addf %2, %3 : vector<384x384xf32>
    %cst = arith.constant 1.000000e-01 : f32
    %5 = vector.broadcast %cst : f32 to vector<384x384xf32>
    %6 = arith.mulf %5, %4 : vector<384x384xf32>
    %7 = arith.maximumf %4, %6 : vector<384x384xf32>
    %8 = math.exp %7 : vector<384x384xf32>
    %c0_3 = arith.constant 0 : index
    %c0_4 = arith.constant 0 : index
    %9 = vector.load %arg5[%c0_3, %c0_4] : memref<384x384xi8, #tpu.memory_space<vmem>>, vector<384x384xi8>
    %10 = arith.sitofp %9 : vector<384x384xi8> to vector<384x384xf32>
    %11 = arith.mulf %10, %8 : vector<384x384xf32>
    %12 = arith.truncf %11 : vector<384x384xf32> to vector<384x384xbf16>
    %c0_5 = arith.constant 0 : index
    %c0_6 = arith.constant 0 : index
    %13 = vector.load %arg4[%c0_5, %c0_6] : memref<384x128xbf16, #tpu.memory_space<vmem>>, vector<384x128xbf16>
    %cst_7 = arith.constant dense<0.000000e+00> : vector<384x128xf32>
    %14 = tpu.matmul %12, %13, %cst_7 {dimension_numbers = #tpu.dot_dimension_numbers<[1], [0], [0], [1], [0, 0, 1, 1], [], []>} : vector<384x384xbf16>, vector<384x128xbf16>, vector<384x128xf32> -> vector<384x128xf32>
    %c0_i32 = arith.constant 0 : i32
    %15 = arith.cmpi eq, %arg1, %c0_i32 : i32
    %16 = arith.extui %15 : i1 to i32
    %c0_i32_8 = arith.constant 0 : i32
    %17 = arith.cmpi ne, %16, %c0_i32_8 : i32
    scf.if %17 {
      %c0_13 = arith.constant 0 : index
      %c0_14 = arith.constant 0 : index
      %24 = vector.load %arg6[%c0_13, %c0_14] : memref<384x128xf32, #tpu.memory_space<vmem>>, vector<384x128xf32>
      tpu.vector_store %arg6[%c0_13, %c0_14], %14 {strides = array<i32>} : memref<384x128xf32, #tpu.memory_space<vmem>>, vector<384x128xf32>,
    } else {
    }
    %c0_i32_9 = arith.constant 0 : i32
    %18 = arith.cmpi sgt, %arg1, %c0_i32_9 : i32
    %19 = arith.extui %18 : i1 to i32
    %c0_i32_10 = arith.constant 0 : i32
    %20 = arith.cmpi ne, %19, %c0_i32_10 : i32
    scf.if %20 {
      %c0_13 = arith.constant 0 : index
      %c0_14 = arith.constant 0 : index
      %24 = vector.load %arg6[%c0_13, %c0_14] : memref<384x128xf32, #tpu.memory_space<vmem>>, vector<384x128xf32>
      %25 = arith.addf %24, %14 : vector<384x128xf32>
      %c0_15 = arith.constant 0 : index
      %c0_16 = arith.constant 0 : index
      %26 = vector.load %arg6[%c0_15, %c0_16] : memref<384x128xf32, #tpu.memory_space<vmem>>, vector<384x128xf32>
      tpu.vector_store %arg6[%c0_15, %c0_16], %25 {strides = array<i32>} : memref<384x128xf32, #tpu.memory_space<vmem>>, vector<384x128xf32>,
    } else {
    }
    %c0_i32_11 = arith.constant 0 : i32
    %21 = arith.cmpi eq, %arg1, %c0_i32_11 : i32
    %22 = arith.extui %21 : i1 to i32
    %c0_i32_12 = arith.constant 0 : i32
    %23 = arith.cmpi ne, %22, %c0_i32_12 : i32
    scf.if %23 {
      %c0_13 = arith.constant 0 : index
      %c0_14 = arith.constant 0 : index
      %24 = vector.load %arg6[%c0_13, %c0_14] : memref<384x128xf32, #tpu.memory_space<vmem>>, vector<384x128xf32>
      %25 = vector.extract_strided_slice %24 {offsets = [0, 8], sizes = [384, 1], strides = [1, 1]} : vector<384x128xf32> to vector<384x1xf32>
      %26 = tpu.reciprocal %25 {approx = true} : vector<384x1xf32> -> vector<384x1xf32>
      %27 = vector.broadcast %26 : vector<384x1xf32> to vector<384x128xf32>
      %28 = arith.mulf %24, %27 : vector<384x128xf32>
      %c0_15 = arith.constant 0 : index
      %c0_16 = arith.constant 0 : index
      %29 = vector.load %arg6[%c0_15, %c0_16] : memref<384x128xf32, #tpu.memory_space<vmem>>, vector<384x128xf32>
      tpu.vector_store %arg6[%c0_15, %c0_16], %28 {strides = array<i32>} : memref<384x128xf32, #tpu.memory_space<vmem>>, vector<384x128xf32>,
    } else {
    }
    return
  }
  func.func @transform_0(%arg0: i32, %arg1: i32) -> (i32, i32) {
    %c0_i32 = arith.constant 0 : i32
    %c0_i32_0 = arith.constant 0 : i32
    return %arg0, %c0_i32 : i32, i32
  }
  func.func @transform_1(%arg0: i32, %arg1: i32) -> (i32, i32) {
    %c0_i32 = arith.constant 0 : i32
    %c0_i32_0 = arith.constant 0 : i32
    return %c0_i32, %arg1 : i32, i32
  }
  func.func @transform_2(%arg0: i32, %arg1: i32) -> (i32, i32) {
    %c0_i32 = arith.constant 0 : i32
    %c0_i32_0 = arith.constant 0 : i32
    return %arg1, %c0_i32 : i32, i32
  }
  func.func @transform_3(%arg0: i32, %arg1: i32) -> (i32, i32) {
    %c0_i32 = arith.constant 0 : i32
    return %arg0, %arg1 : i32, i32
  }
  func.func @transform_4(%arg0: i32, %arg1: i32) -> (i32, i32) {
    %c0_i32 = arith.constant 0 : i32
    %c0_i32_0 = arith.constant 0 : i32
    return %arg0, %c0_i32 : i32, i32
  }
}

</mosaic_0001>

<llo_original>
// kernel: tpu_custom_call.1
$region0: #{tpu_custom_call.1}
  #allocation0 [shape = 'u32[]', space=smem, size = 0x4, offset = 0x4, fixed_abs, tag = 'smem constant byte address 0x4 - core index']
  #allocation1 [shape = 'u32[144,128]{1,0:T(1,128)}', space=vmem, size = 0x12000, scoped, tag = 'internal scratch']
  %s0 = inlined_call_operand.vmem [shape: f32[384,1], index: 0, kind: input, shape index: {}]
  %s1 = inlined_call_operand.vmem [shape: f32[1,384], index: 1, kind: input, shape index: {}]
  %s2 = inlined_call_operand.hbm [shape: bf16[384,128], index: 2, kind: input, shape index: {}]
  %s3 = inlined_call_operand.vmem [shape: s8[384,384], index: 3, kind: input, shape index: {}]
  %s4 = inlined_call_operand.hbm [shape: f32[384,128], index: 4, kind: output, shape index: {}]
  %s5 = sld [smem:[#allocation0]]
  $region42: #{tpu_custom_call.1} parent=0
    _
  %s7 = ssub.s32 1, %s5
  %s8 = scalar_select 0, %s7, %s5
  $region1: #{tpu_custom_call.1} parent=0
    #allocation2 [shape = 'u8[98304]{0}', space=vmem, size = 0x18000, scoped, tag = 'input window, operand 2, single buffered']
    #allocation3 [shape = 's32[1]{0}', space=sflag, size = 0x4, scoped, tag = 'scoped memory for tpu_custom_call.1']
    #allocation4 [shape = 's32[1]{0}', space=sflag, size = 0x4, scoped, tag = 'scoped memory for tpu_custom_call.1']
    #allocation5 [shape = 'u8[196608]{0}', space=vmem, size = 0x30000, scoped, tag = 'output window, operand 0, single buffered']
    %9 = vsyncpa [#allocation3], 0
    %10 = vsyncpa [#allocation4], 0
    // Predicated region
    $region2: #{tpu_custom_call.1} parent=1 // pred_check
      _
    $region3: #{tpu_custom_call.1} parent=1 // pred_check_branch
      %12 = sbr.rel (0) target = $region5
    $region4: #{tpu_custom_call.1} parent=1 // pred_region
      _
    $region5: #{tpu_custom_call.1} parent=1 // pred_fallthru
      _
    // Predicated region
    $region6: #{tpu_custom_call.1} parent=1 // pred_check
      _
    $region7: #{tpu_custom_call.1} parent=1 // pred_check_branch
      %14 = sbr.rel (0) target = $region9
    $region8: #{tpu_custom_call.1} parent=1 // pred_region
      _
    $region9: #{tpu_custom_call.1} parent=1 // pred_fallthru
      _
    // Predicated region
    $region10: #{tpu_custom_call.1} parent=1 // pred_check
      _
    $region11: #{tpu_custom_call.1} parent=1 // pred_check_branch
      %16 = sbr.rel (0) target = $region13
    $region12: #{tpu_custom_call.1} parent=1 // pred_region
      %s18 = ssub.s32 3072, 3072
      %19 = vsyncadd [#allocation3], %s18
      %s20 = sshll.u32 [#allocation2], 4
      %s21 = int_to_ptr.vmem [resolvable:$true] %s20
      %26 = dma.hbm_to_vmem [thread:$0]  %s2, 3072, %s21, [#allocation3], 64, 64, 4
    $region13: #{tpu_custom_call.1} parent=1 // pred_fallthru
      _
    // Predicated region
    $region14: #{tpu_custom_call.1} parent=1 // pred_check
      _
    $region15: #{tpu_custom_call.1} parent=1 // pred_check_branch
      %28 = sbr.rel (0) target = $region17
    $region16: #{tpu_custom_call.1} parent=1 // pred_region
      _
    $region17: #{tpu_custom_call.1} parent=1 // pred_fallthru
      _
    // Predicated region
    $region18: #{tpu_custom_call.1} parent=1 // pred_check
      _
    $region19: #{tpu_custom_call.1} parent=1 // pred_check_branch
      %30 = sbr.rel (0) target = $region21
    $region20: #{tpu_custom_call.1} parent=1 // pred_region
      %31 = dma.done [#allocation3], 3072
    $region21: #{tpu_custom_call.1} parent=1 // pred_fallthru
      _
    %v33 = vld [vmem:[%s0] sm:$0xff]
    %v34 = vld [vmem:[%s0 + $0x8] sm:$0xff]
    %v35 = vld [vmem:[%s0 + $0x10] sm:$0xff]
    %v36 = vld [vmem:[%s0 + $0x18] sm:$0xff]
    %v37 = vld [vmem:[%s0 + $0x20] sm:$0xff]
    %v38 = vld [vmem:[%s0 + $0x28] sm:$0xff]
    %v39 = vld [vmem:[%s0 + $0x30] sm:$0xff]
    %v40 = vld [vmem:[%s0 + $0x38] sm:$0xff]
    %v41 = vld [vmem:[%s0 + $0x40] sm:$0xff]
    %v42 = vld [vmem:[%s0 + $0x48] sm:$0xff]
    %v43 = vld [vmem:[%s0 + $0x50] sm:$0xff]
    %v44 = vld [vmem:[%s0 + $0x58] sm:$0xff]
    %v45 = vld [vmem:[%s0 + $0x60] sm:$0xff]
    %v46 = vld [vmem:[%s0 + $0x68] sm:$0xff]
    %v47 = vld [vmem:[%s0 + $0x70] sm:$0xff]
    %v48 = vld [vmem:[%s0 + $0x78] sm:$0xff]
    %v49 = vld [vmem:[%s0 + $0x80] sm:$0xff]
    %v50 = vld [vmem:[%s0 + $0x88] sm:$0xff]
    %v51 = vld [vmem:[%s0 + $0x90] sm:$0xff]
    %v52 = vld [vmem:[%s0 + $0x98] sm:$0xff]
    %v53 = vld [vmem:[%s0 + $0xa0] sm:$0xff]
    %v54 = vld [vmem:[%s0 + $0xa8] sm:$0xff]
    %v55 = vld [vmem:[%s0 + $0xb0] sm:$0xff]
    %v56 = vld [vmem:[%s0 + $0xb8] sm:$0xff]
    %v57 = vld [vmem:[%s0 + $0xc0] sm:$0xff]
    %v58 = vld [vmem:[%s0 + $0xc8] sm:$0xff]
    %v59 = vld [vmem:[%s0 + $0xd0] sm:$0xff]
    %v60 = vld [vmem:[%s0 + $0xd8] sm:$0xff]
    %v61 = vld [vmem:[%s0 + $0xe0] sm:$0xff]
    %v62 = vld [vmem:[%s0 + $0xe8] sm:$0xff]
    %v63 = vld [vmem:[%s0 + $0xf0] sm:$0xff]
    %v64 = vld [vmem:[%s0 + $0xf8] sm:$0xff]
    %v65 = vld [vmem:[%s0 + $0x100] sm:$0xff]
    %v66 = vld [vmem:[%s0 + $0x108] sm:$0xff]
    %v67 = vld [vmem:[%s0 + $0x110] sm:$0xff]
    %v68 = vld [vmem:[%s0 + $0x118] sm:$0xff]
    %v69 = vld [vmem:[%s0 + $0x120] sm:$0xff]
    %v70 = vld [vmem:[%s0 + $0x128] sm:$0xff]
    %v71 = vld [vmem:[%s0 + $0x130] sm:$0xff]
    %v72 = vld [vmem:[%s0 + $0x138] sm:$0xff]
    %v73 = vld [vmem:[%s0 + $0x140] sm:$0xff]
    %v74 = vld [vmem:[%s0 + $0x148] sm:$0xff]
    %v75 = vld [vmem:[%s0 + $0x150] sm:$0xff]
    %v76 = vld [vmem:[%s0 + $0x158] sm:$0xff]
    %v77 = vld [vmem:[%s0 + $0x160] sm:$0xff]
    %v78 = vld [vmem:[%s0 + $0x168] sm:$0xff]
    %v79 = vld [vmem:[%s0 + $0x170] sm:$0xff]
    %v80 = vld [vmem:[%s0 + $0x178] sm:$0xff]
    %v81 = vld [vmem:[%s1] sm:$0x7]
    %83 = vset.pattern.permute.xlu0 0
    %84 = vperm.xlu0 %83, %v33
    %v85 = vpop.permute.xlu0 %84
    %88 = vset.pattern.permute.xlu0 0
    %89 = vperm.xlu0 %88, %v34
    %v90 = vpop.permute.xlu0 %89
    %93 = vset.pattern.permute.xlu0 0
    %94 = vperm.xlu0 %93, %v35
    %v95 = vpop.permute.xlu0 %94
    %98 = vset.pattern.permute.xlu0 0
    %99 = vperm.xlu0 %98, %v36
    %v100 = vpop.permute.xlu0 %99
    %103 = vset.pattern.permute.xlu0 0
    %104 = vperm.xlu0 %103, %v37
    %v105 = vpop.permute.xlu0 %104
    %108 = vset.pattern.permute.xlu0 0
    %109 = vperm.xlu0 %108, %v38
    %v110 = vpop.permute.xlu0 %109
    %113 = vset.pattern.permute.xlu0 0
    %114 = vperm.xlu0 %113, %v39
    %v115 = vpop.permute.xlu0 %114
    %118 = vset.pattern.permute.xlu0 0
    %119 = vperm.xlu0 %118, %v40
    %v120 = vpop.permute.xlu0 %119
    %123 = vset.pattern.permute.xlu0 0
    %124 = vperm.xlu0 %123, %v41
    %v125 = vpop.permute.xlu0 %124
    %128 = vset.pattern.permute.xlu0 0
    %129 = vperm.xlu0 %128, %v42
    %v130 = vpop.permute.xlu0 %129
    %133 = vset.pattern.permute.xlu0 0
    %134 = vperm.xlu0 %133, %v43
    %v135 = vpop.permute.xlu0 %134
    %138 = vset.pattern.permute.xlu0 0
    %139 = vperm.xlu0 %138, %v44
    %v140 = vpop.permute.xlu0 %139
    %143 = vset.pattern.permute.xlu0 0
    %144 = vperm.xlu0 %143, %v45
    %v145 = vpop.permute.xlu0 %144
    %148 = vset.pattern.permute.xlu0 0
    %149 = vperm.xlu0 %148, %v46
    %v150 = vpop.permute.xlu0 %149
    %153 = vset.pattern.permute.xlu0 0
    %154 = vperm.xlu0 %153, %v47
    %v155 = vpop.permute.xlu0 %154
    %158 = vset.pattern.permute.xlu0 0
    %159 = vperm.xlu0 %158, %v48
    %v160 = vpop.permute.xlu0 %159
    %163 = vset.pattern.permute.xlu0 0
    %164 = vperm.xlu0 %163, %v49
    %v165 = vpop.permute.xlu0 %164
    %168 = vset.pattern.permute.xlu0 0
    %169 = vperm.xlu0 %168, %v50
    %v170 = vpop.permute.xlu0 %169
    %173 = vset.pattern.permute.xlu0 0
    %174 = vperm.xlu0 %173, %v51
    %v175 = vpop.permute.xlu0 %174
    %178 = vset.pattern.permute.xlu0 0
    %179 = vperm.xlu0 %178, %v52
    %v180 = vpop.permute.xlu0 %179
    %183 = vset.pattern.permute.xlu0 0
    %184 = vperm.xlu0 %183, %v53
    %v185 = vpop.permute.xlu0 %184
    %188 = vset.pattern.permute.xlu0 0
    %189 = vperm.xlu0 %188, %v54
    %v190 = vpop.permute.xlu0 %189
    %193 = vset.pattern.permute.xlu0 0
    %194 = vperm.xlu0 %193, %v55
    %v195 = vpop.permute.xlu0 %194
    %198 = vset.pattern.permute.xlu0 0
    %199 = vperm.xlu0 %198, %v56
    %v200 = vpop.permute.xlu0 %199
    %203 = vset.pattern.permute.xlu0 0
    %204 = vperm.xlu0 %203, %v57
    %v205 = vpop.permute.xlu0 %204
    %208 = vset.pattern.permute.xlu0 0
    %209 = vperm.xlu0 %208, %v58
    %v210 = vpop.permute.xlu0 %209
    %213 = vset.pattern.permute.xlu0 0
    %214 = vperm.xlu0 %213, %v59
    %v215 = vpop.permute.xlu0 %214
    %218 = vset.pattern.permute.xlu0 0
    %219 = vperm.xlu0 %218, %v60
    %v220 = vpop.permute.xlu0 %219
    %223 = vset.pattern.permute.xlu0 0
    %224 = vperm.xlu0 %223, %v61
    %v225 = vpop.permute.xlu0 %224
    %228 = vset.pattern.permute.xlu0 0
    %229 = vperm.xlu0 %228, %v62
    %v230 = vpop.permute.xlu0 %229
    %233 = vset.pattern.permute.xlu0 0
    %234 = vperm.xlu0 %233, %v63
    %v235 = vpop.permute.xlu0 %234
    %238 = vset.pattern.permute.xlu0 0
    %239 = vperm.xlu0 %238, %v64
    %v240 = vpop.permute.xlu0 %239
    %243 = vset.pattern.permute.xlu0 0
    %244 = vperm.xlu0 %243, %v65
    %v245 = vpop.permute.xlu0 %244
    %248 = vset.pattern.permute.xlu0 0
    %249 = vperm.xlu0 %248, %v66
    %v250 = vpop.permute.xlu0 %249
    %253 = vset.pattern.permute.xlu0 0
    %254 = vperm.xlu0 %253, %v67
    %v255 = vpop.permute.xlu0 %254
    %258 = vset.pattern.permute.xlu0 0
    %259 = vperm.xlu0 %258, %v68
    %v260 = vpop.permute.xlu0 %259
    %263 = vset.pattern.permute.xlu0 0
    %264 = vperm.xlu0 %263, %v69
    %v265 = vpop.permute.xlu0 %264
    %268 = vset.pattern.permute.xlu0 0
    %269 = vperm.xlu0 %268, %v70
    %v270 = vpop.permute.xlu0 %269
    %273 = vset.pattern.permute.xlu0 0
    %274 = vperm.xlu0 %273, %v71
    %v275 = vpop.permute.xlu0 %274
    %278 = vset.pattern.permute.xlu0 0
    %279 = vperm.xlu0 %278, %v72
    %v280 = vpop.permute.xlu0 %279
    %283 = vset.pattern.permute.xlu0 0
    %284 = vperm.xlu0 %283, %v73
    %v285 = vpop.permute.xlu0 %284
    %288 = vset.pattern.permute.xlu0 0
    %289 = vperm.xlu0 %288, %v74
    %v290 = vpop.permute.xlu0 %289
    %293 = vset.pattern.permute.xlu0 0
    %294 = vperm.xlu0 %293, %v75
    %v295 = vpop.permute.xlu0 %294
    %298 = vset.pattern.permute.xlu0 0
    %299 = vperm.xlu0 %298, %v76
    %v300 = vpop.permute.xlu0 %299
    %303 = vset.pattern.permute.xlu0 0
    %304 = vperm.xlu0 %303, %v77
    %v305 = vpop.permute.xlu0 %304
    %308 = vset.pattern.permute.xlu0 0
    %309 = vperm.xlu0 %308, %v78
    %v310 = vpop.permute.xlu0 %309
    %313 = vset.pattern.permute.xlu0 0
    %314 = vperm.xlu0 %313, %v79
    %v315 = vpop.permute.xlu0 %314
    %318 = vset.pattern.permute.xlu0 0
    %319 = vperm.xlu0 %318, %v80
    %v320 = vpop.permute.xlu0 %319
    %v323 = vlaneseq
    %v324 = vshrl.u32 %v323, 7
    %v325 = vsub.s32 0, %v324
    %v326 = vrot.slane %v81, %v325
    %v327 = vlaneseq
    %v328 = vshrl.u32 %v327, 7
    %v329 = vsub.s32 1, %v328
    %v330 = vrot.slane %v81, %v329
    %v331 = vlaneseq
    %v332 = vshrl.u32 %v331, 7
    %v333 = vsub.s32 2, %v332
    %v334 = vrot.slane %v81, %v333
    %v338 = vadd.f32 %v85, %v326
    %v339 = vadd.f32 %v85, %v330
    %v340 = vadd.f32 %v85, %v334
    %v341 = vadd.f32 %v90, %v326
    %v342 = vadd.f32 %v90, %v330
    %v343 = vadd.f32 %v90, %v334
    %v344 = vadd.f32 %v95, %v326
    %v345 = vadd.f32 %v95, %v330
    %v346 = vadd.f32 %v95, %v334
    %v347 = vadd.f32 %v100, %v326
    %v348 = vadd.f32 %v100, %v330
    %v349 = vadd.f32 %v100, %v334
    %v350 = vadd.f32 %v105, %v326
    %v351 = vadd.f32 %v105, %v330
    %v352 = vadd.f32 %v105, %v334
    %v353 = vadd.f32 %v110, %v326
    %v354 = vadd.f32 %v110, %v330
    %v355 = vadd.f32 %v110, %v334
    %v356 = vadd.f32 %v115, %v326
    %v357 = vadd.f32 %v115, %v330
    %v358 = vadd.f32 %v115, %v334
    %v359 = vadd.f32 %v120, %v326
    %v360 = vadd.f32 %v120, %v330
    %v361 = vadd.f32 %v120, %v334
    %v362 = vadd.f32 %v125, %v326
    %v363 = vadd.f32 %v125, %v330
    %v364 = vadd.f32 %v125, %v334
    %v365 = vadd.f32 %v130, %v326
    %v366 = vadd.f32 %v130, %v330
    %v367 = vadd.f32 %v130, %v334
    %v368 = vadd.f32 %v135, %v326
    %v369 = vadd.f32 %v135, %v330
    %v370 = vadd.f32 %v135, %v334
    %v371 = vadd.f32 %v140, %v326
    %v372 = vadd.f32 %v140, %v330
    %v373 = vadd.f32 %v140, %v334
    %v374 = vadd.f32 %v145, %v326
    %v375 = vadd.f32 %v145, %v330
    %v376 = vadd.f32 %v145, %v334
    %v377 = vadd.f32 %v150, %v326
    %v378 = vadd.f32 %v150, %v330
    %v379 = vadd.f32 %v150, %v334
    %v380 = vadd.f32 %v155, %v326
    %v381 = vadd.f32 %v155, %v330
    %v382 = vadd.f32 %v155, %v334
    %v383 = vadd.f32 %v160, %v326
    %v384 = vadd.f32 %v160, %v330
    %v385 = vadd.f32 %v160, %v334
    %v386 = vadd.f32 %v165, %v326
    %v387 = vadd.f32 %v165, %v330
    %v388 = vadd.f32 %v165, %v334
    %v389 = vadd.f32 %v170, %v326
    %v390 = vadd.f32 %v170, %v330
    %v391 = vadd.f32 %v170, %v334
    %v392 = vadd.f32 %v175, %v326
    %v393 = vadd.f32 %v175, %v330
    %v394 = vadd.f32 %v175, %v334
    %v395 = vadd.f32 %v180, %v326
    %v396 = vadd.f32 %v180, %v330
    %v397 = vadd.f32 %v180, %v334
    %v398 = vadd.f32 %v185, %v326
    %v399 = vadd.f32 %v185, %v330
    %v400 = vadd.f32 %v185, %v334
    %v401 = vadd.f32 %v190, %v326
    %v402 = vadd.f32 %v190, %v330
    %v403 = vadd.f32 %v190, %v334
    %v404 = vadd.f32 %v195, %v326
    %v405 = vadd.f32 %v195, %v330
    %v406 = vadd.f32 %v195, %v334
    %v407 = vadd.f32 %v200, %v326
    %v408 = vadd.f32 %v200, %v330
    %v409 = vadd.f32 %v200, %v334
    %v410 = vadd.f32 %v205, %v326
    %v411 = vadd.f32 %v205, %v330
    %v412 = vadd.f32 %v205, %v334
    %v413 = vadd.f32 %v210, %v326
    %v414 = vadd.f32 %v210, %v330
    %v415 = vadd.f32 %v210, %v334
    %v416 = vadd.f32 %v215, %v326
    %v417 = vadd.f32 %v215, %v330
    %v418 = vadd.f32 %v215, %v334
    %v419 = vadd.f32 %v220, %v326
    %v420 = vadd.f32 %v220, %v330
    %v421 = vadd.f32 %v220, %v334
    %v422 = vadd.f32 %v225, %v326
    %v423 = vadd.f32 %v225, %v330
    %v424 = vadd.f32 %v225, %v334
    %v425 = vadd.f32 %v230, %v326
    %v426 = vadd.f32 %v230, %v330
    %v427 = vadd.f32 %v230, %v334
    %v428 = vadd.f32 %v235, %v326
    %v429 = vadd.f32 %v235, %v330
    %v430 = vadd.f32 %v235, %v334
    %v431 = vadd.f32 %v240, %v326
    %v432 = vadd.f32 %v240, %v330
    %v433 = vadd.f32 %v240, %v334
    %v434 = vadd.f32 %v245, %v326
    %v435 = vadd.f32 %v245, %v330
    %v436 = vadd.f32 %v245, %v334
    %v437 = vadd.f32 %v250, %v326
    %v438 = vadd.f32 %v250, %v330
    %v439 = vadd.f32 %v250, %v334
    %v440 = vadd.f32 %v255, %v326
    %v441 = vadd.f32 %v255, %v330
    %v442 = vadd.f32 %v255, %v334
    %v443 = vadd.f32 %v260, %v326
    %v444 = vadd.f32 %v260, %v330
    %v445 = vadd.f32 %v260, %v334
    %v446 = vadd.f32 %v265, %v326
    %v447 = vadd.f32 %v265, %v330
    %v448 = vadd.f32 %v265, %v334
    %v449 = vadd.f32 %v270, %v326
    %v450 = vadd.f32 %v270, %v330
    %v451 = vadd.f32 %v270, %v334
    %v452 = vadd.f32 %v275, %v326
    %v453 = vadd.f32 %v275, %v330
    %v454 = vadd.f32 %v275, %v334
    %v455 = vadd.f32 %v280, %v326
    %v456 = vadd.f32 %v280, %v330
    %v457 = vadd.f32 %v280, %v334
    %v458 = vadd.f32 %v285, %v326
    %v459 = vadd.f32 %v285, %v330
    %v460 = vadd.f32 %v285, %v334
    %v461 = vadd.f32 %v290, %v326
    %v462 = vadd.f32 %v290, %v330
    %v463 = vadd.f32 %v290, %v334
    %v464 = vadd.f32 %v295, %v326
    %v465 = vadd.f32 %v295, %v330
    %v466 = vadd.f32 %v295, %v334
    %v467 = vadd.f32 %v300, %v326
    %v468 = vadd.f32 %v300, %v330
    %v469 = vadd.f32 %v300, %v334
    %v470 = vadd.f32 %v305, %v326
    %v471 = vadd.f32 %v305, %v330
    %v472 = vadd.f32 %v305, %v334
    %v473 = vadd.f32 %v310, %v326
    %v474 = vadd.f32 %v310, %v330
    %v475 = vadd.f32 %v310, %v334
    %v476 = vadd.f32 %v315, %v326
    %v477 = vadd.f32 %v315, %v330
    %v478 = vadd.f32 %v315, %v334
    %v479 = vadd.f32 %v320, %v326
    %v480 = vadd.f32 %v320, %v330
    %v481 = vadd.f32 %v320, %v334
    %v482 = vmul.f32 %v338, 0.1
    %v483 = vmul.f32 %v339, 0.1
    %v484 = vmul.f32 %v340, 0.1
    %v485 = vmul.f32 %v341, 0.1
    %v486 = vmul.f32 %v342, 0.1
    %v487 = vmul.f32 %v343, 0.1
    %v488 = vmul.f32 %v344, 0.1
    %v489 = vmul.f32 %v345, 0.1
    %v490 = vmul.f32 %v346, 0.1
    %v491 = vmul.f32 %v347, 0.1
    %v492 = vmul.f32 %v348, 0.1
    %v493 = vmul.f32 %v349, 0.1
    %v494 = vmul.f32 %v350, 0.1
    %v495 = vmul.f32 %v351, 0.1
    %v496 = vmul.f32 %v352, 0.1
    %v497 = vmul.f32 %v353, 0.1
    %v498 = vmul.f32 %v354, 0.1
    %v499 = vmul.f32 %v355, 0.1
    %v500 = vmul.f32 %v356, 0.1
    %v501 = vmul.f32 %v357, 0.1
    %v502 = vmul.f32 %v358, 0.1
    %v503 = vmul.f32 %v359, 0.1
    %v504 = vmul.f32 %v360, 0.1
    %v505 = vmul.f32 %v361, 0.1
    %v506 = vmul.f32 %v362, 0.1
    %v507 = vmul.f32 %v363, 0.1
    %v508 = vmul.f32 %v364, 0.1
    %v509 = vmul.f32 %v365, 0.1
    %v510 = vmul.f32 %v366, 0.1
    %v511 = vmul.f32 %v367, 0.1
    %v512 = vmul.f32 %v368, 0.1
    %v513 = vmul.f32 %v369, 0.1
    %v514 = vmul.f32 %v370, 0.1
    %v515 = vmul.f32 %v371, 0.1
    %v516 = vmul.f32 %v372, 0.1
    %v517 = vmul.f32 %v373, 0.1
    %v518 = vmul.f32 %v374, 0.1
    %v519 = vmul.f32 %v375, 0.1
    %v520 = vmul.f32 %v376, 0.1
    %v521 = vmul.f32 %v377, 0.1
    %v522 = vmul.f32 %v378, 0.1
    %v523 = vmul.f32 %v379, 0.1
    %v524 = vmul.f32 %v380, 0.1
    %v525 = vmul.f32 %v381, 0.1
    %v526 = vmul.f32 %v382, 0.1
    %v527 = vmul.f32 %v383, 0.1
    %v528 = vmul.f32 %v384, 0.1
    %v529 = vmul.f32 %v385, 0.1
    %v530 = vmul.f32 %v386, 0.1
    %v531 = vmul.f32 %v387, 0.1
    %v532 = vmul.f32 %v388, 0.1
    %v533 = vmul.f32 %v389, 0.1
    %v534 = vmul.f32 %v390, 0.1
    %v535 = vmul.f32 %v391, 0.1
    %v536 = vmul.f32 %v392, 0.1
    %v537 = vmul.f32 %v393, 0.1
    %v538 = vmul.f32 %v394, 0.1
    %v539 = vmul.f32 %v395, 0.1
    %v540 = vmul.f32 %v396, 0.1
    %v541 = vmul.f32 %v397, 0.1
    %v542 = vmul.f32 %v398, 0.1
    %v543 = vmul.f32 %v399, 0.1
    %v544 = vmul.f32 %v400, 0.1
    %v545 = vmul.f32 %v401, 0.1
    %v546 = vmul.f32 %v402, 0.1
    %v547 = vmul.f32 %v403, 0.1
    %v548 = vmul.f32 %v404, 0.1
    %v549 = vmul.f32 %v405, 0.1
    %v550 = vmul.f32 %v406, 0.1
    %v551 = vmul.f32 %v407, 0.1
    %v552 = vmul.f32 %v408, 0.1
    %v553 = vmul.f32 %v409, 0.1
    %v554 = vmul.f32 %v410, 0.1
    %v555 = vmul.f32 %v411, 0.1
    %v556 = vmul.f32 %v412, 0.1
    %v557 = vmul.f32 %v413, 0.1
    %v558 = vmul.f32 %v414, 0.1
    %v559 = vmul.f32 %v415, 0.1
    %v560 = vmul.f32 %v416, 0.1
    %v561 = vmul.f32 %v417, 0.1
    %v562 = vmul.f32 %v418, 0.1
    %v563 = vmul.f32 %v419, 0.1
    %v564 = vmul.f32 %v420, 0.1
    %v565 = vmul.f32 %v421, 0.1
    %v566 = vmul.f32 %v422, 0.1
    %v567 = vmul.f32 %v423, 0.1
    %v568 = vmul.f32 %v424, 0.1
    %v569 = vmul.f32 %v425, 0.1
    %v570 = vmul.f32 %v426, 0.1
    %v571 = vmul.f32 %v427, 0.1
    %v572 = vmul.f32 %v428, 0.1
    %v573 = vmul.f32 %v429, 0.1
    %v574 = vmul.f32 %v430, 0.1
    %v575 = vmul.f32 %v431, 0.1
    %v576 = vmul.f32 %v432, 0.1
    %v577 = vmul.f32 %v433, 0.1
    %v578 = vmul.f32 %v434, 0.1
    %v579 = vmul.f32 %v435, 0.1
    %v580 = vmul.f32 %v436, 0.1
    %v581 = vmul.f32 %v437, 0.1
    %v582 = vmul.f32 %v438, 0.1
    %v583 = vmul.f32 %v439, 0.1
    %v584 = vmul.f32 %v440, 0.1
    %v585 = vmul.f32 %v441, 0.1
    %v586 = vmul.f32 %v442, 0.1
    %v587 = vmul.f32 %v443, 0.1
    %v588 = vmul.f32 %v444, 0.1
    %v589 = vmul.f32 %v445, 0.1
    %v590 = vmul.f32 %v446, 0.1
    %v591 = vmul.f32 %v447, 0.1
    %v592 = vmul.f32 %v448, 0.1
    %v593 = vmul.f32 %v449, 0.1
    %v594 = vmul.f32 %v450, 0.1
    %v595 = vmul.f32 %v451, 0.1
    %v596 = vmul.f32 %v452, 0.1
    %v597 = vmul.f32 %v453, 0.1
    %v598 = vmul.f32 %v454, 0.1
    %v599 = vmul.f32 %v455, 0.1
    %v600 = vmul.f32 %v456, 0.1
    %v601 = vmul.f32 %v457, 0.1
    %v602 = vmul.f32 %v458, 0.1
    %v603 = vmul.f32 %v459, 0.1
    %v604 = vmul.f32 %v460, 0.1
    %v605 = vmul.f32 %v461, 0.1
    %v606 = vmul.f32 %v462, 0.1
    %v607 = vmul.f32 %v463, 0.1
    %v608 = vmul.f32 %v464, 0.1
    %v609 = vmul.f32 %v465, 0.1
    %v610 = vmul.f32 %v466, 0.1
    %v611 = vmul.f32 %v467, 0.1
    %v612 = vmul.f32 %v468, 0.1
    %v613 = vmul.f32 %v469, 0.1
    %v614 = vmul.f32 %v470, 0.1
    %v615 = vmul.f32 %v471, 0.1
    %v616 = vmul.f32 %v472, 0.1
    %v617 = vmul.f32 %v473, 0.1
    %v618 = vmul.f32 %v474, 0.1
    %v619 = vmul.f32 %v475, 0.1
    %v620 = vmul.f32 %v476, 0.1
    %v621 = vmul.f32 %v477, 0.1
    %v622 = vmul.f32 %v478, 0.1
    %v623 = vmul.f32 %v479, 0.1
    %v624 = vmul.f32 %v480, 0.1
    %v625 = vmul.f32 %v481, 0.1
    %v626 = vmax.f32 %v338, %v482
    %v627 = vmax.f32 %v339, %v483
    %v628 = vmax.f32 %v340, %v484
    %v629 = vmax.f32 %v341, %v485
    %v630 = vmax.f32 %v342, %v486
    %v631 = vmax.f32 %v343, %v487
    %v632 = vmax.f32 %v344, %v488
    %v633 = vmax.f32 %v345, %v489
    %v634 = vmax.f32 %v346, %v490
    %v635 = vmax.f32 %v347, %v491
    %v636 = vmax.f32 %v348, %v492
    %v637 = vmax.f32 %v349, %v493
    %v638 = vmax.f32 %v350, %v494
    %v639 = vmax.f32 %v351, %v495
    %v640 = vmax.f32 %v352, %v496
    %v641 = vmax.f32 %v353, %v497
    %v642 = vmax.f32 %v354, %v498
    %v643 = vmax.f32 %v355, %v499
    %v644 = vmax.f32 %v356, %v500
    %v645 = vmax.f32 %v357, %v501
    %v646 = vmax.f32 %v358, %v502
    %v647 = vmax.f32 %v359, %v503
    %v648 = vmax.f32 %v360, %v504
    %v649 = vmax.f32 %v361, %v505
    %v650 = vmax.f32 %v362, %v506
    %v651 = vmax.f32 %v363, %v507
    %v652 = vmax.f32 %v364, %v508
    %v653 = vmax.f32 %v365, %v509
    %v654 = vmax.f32 %v366, %v510
    %v655 = vmax.f32 %v367, %v511
    %v656 = vmax.f32 %v368, %v512
    %v657 = vmax.f32 %v369, %v513
    %v658 = vmax.f32 %v370, %v514
    %v659 = vmax.f32 %v371, %v515
    %v660 = vmax.f32 %v372, %v516
    %v661 = vmax.f32 %v373, %v517
    %v662 = vmax.f32 %v374, %v518
    %v663 = vmax.f32 %v375, %v519
    %v664 = vmax.f32 %v376, %v520
    %v665 = vmax.f32 %v377, %v521
    %v666 = vmax.f32 %v378, %v522
    %v667 = vmax.f32 %v379, %v523
    %v668 = vmax.f32 %v380, %v524
    %v669 = vmax.f32 %v381, %v525
    %v670 = vmax.f32 %v382, %v526
    %v671 = vmax.f32 %v383, %v527
    %v672 = vmax.f32 %v384, %v528
    %v673 = vmax.f32 %v385, %v529
    %v674 = vmax.f32 %v386, %v530
    %v675 = vmax.f32 %v387, %v531
    %v676 = vmax.f32 %v388, %v532
    %v677 = vmax.f32 %v389, %v533
    %v678 = vmax.f32 %v390, %v534
    %v679 = vmax.f32 %v391, %v535
    %v680 = vmax.f32 %v392, %v536
    %v681 = vmax.f32 %v393, %v537
    %v682 = vmax.f32 %v394, %v538
    %v683 = vmax.f32 %v395, %v539
    %v684 = vmax.f32 %v396, %v540
    %v685 = vmax.f32 %v397, %v541
    %v686 = vmax.f32 %v398, %v542
    %v687 = vmax.f32 %v399, %v543
    %v688 = vmax.f32 %v400, %v544
    %v689 = vmax.f32 %v401, %v545
    %v690 = vmax.f32 %v402, %v546
    %v691 = vmax.f32 %v403, %v547
    %v692 = vmax.f32 %v404, %v548
    %v693 = vmax.f32 %v405, %v549
    %v694 = vmax.f32 %v406, %v550
    %v695 = vmax.f32 %v407, %v551
    %v696 = vmax.f32 %v408, %v552
    %v697 = vmax.f32 %v409, %v553
    %v698 = vmax.f32 %v410, %v554
    %v699 = vmax.f32 %v411, %v555
    %v700 = vmax.f32 %v412, %v556
    %v701 = vmax.f32 %v413, %v557
    %v702 = vmax.f32 %v414, %v558
    %v703 = vmax.f32 %v415, %v559
    %v704 = vmax.f32 %v416, %v560
    %v705 = vmax.f32 %v417, %v561
    %v706 = vmax.f32 %v418, %v562
    %v707 = vmax.f32 %v419, %v563
    %v708 = vmax.f32 %v420, %v564
    %v709 = vmax.f32 %v421, %v565
    %v710 = vmax.f32 %v422, %v566
    %v711 = vmax.f32 %v423, %v567
    %v712 = vmax.f32 %v424, %v568
    %v713 = vmax.f32 %v425, %v569
    %v714 = vmax.f32 %v426, %v570
    %v715 = vmax.f32 %v427, %v571
    %v716 = vmax.f32 %v428, %v572
    %v717 = vmax.f32 %v429, %v573
    %v718 = vmax.f32 %v430, %v574
    %v719 = vmax.f32 %v431, %v575
    %v720 = vmax.f32 %v432, %v576
    %v721 = vmax.f32 %v433, %v577
    %v722 = vmax.f32 %v434, %v578
    %v723 = vmax.f32 %v435, %v579
    %v724 = vmax.f32 %v436, %v580
    %v725 = vmax.f32 %v437, %v581
    %v726 = vmax.f32 %v438, %v582
    %v727 = vmax.f32 %v439, %v583
    %v728 = vmax.f32 %v440, %v584
    %v729 = vmax.f32 %v441, %v585
    %v730 = vmax.f32 %v442, %v586
    %v731 = vmax.f32 %v443, %v587
    %v732 = vmax.f32 %v444, %v588
    %v733 = vmax.f32 %v445, %v589
    %v734 = vmax.f32 %v446, %v590
    %v735 = vmax.f32 %v447, %v591
    %v736 = vmax.f32 %v448, %v592
    %v737 = vmax.f32 %v449, %v593
    %v738 = vmax.f32 %v450, %v594
    %v739 = vmax.f32 %v451, %v595
    %v740 = vmax.f32 %v452, %v596
    %v741 = vmax.f32 %v453, %v597
    %v742 = vmax.f32 %v454, %v598
    %v743 = vmax.f32 %v455, %v599
    %v744 = vmax.f32 %v456, %v600
    %v745 = vmax.f32 %v457, %v601
    %v746 = vmax.f32 %v458, %v602
    %v747 = vmax.f32 %v459, %v603
    %v748 = vmax.f32 %v460, %v604
    %v749 = vmax.f32 %v461, %v605
    %v750 = vmax.f32 %v462, %v606
    %v751 = vmax.f32 %v463, %v607
    %v752 = vmax.f32 %v464, %v608
    %v753 = vmax.f32 %v465, %v609
    %v754 = vmax.f32 %v466, %v610
    %v755 = vmax.f32 %v467, %v611
    %v756 = vmax.f32 %v468, %v612
    %v757 = vmax.f32 %v469, %v613
    %v758 = vmax.f32 %v470, %v614
    %v759 = vmax.f32 %v471, %v615
    %v760 = vmax.f32 %v472, %v616
    %v761 = vmax.f32 %v473, %v617
    %v762 = vmax.f32 %v474, %v618
    %v763 = vmax.f32 %v475, %v619
    %v764 = vmax.f32 %v476, %v620
    %v765 = vmax.f32 %v477, %v621
    %v766 = vmax.f32 %v478, %v622
    %v767 = vmax.f32 %v479, %v623
    %v768 = vmax.f32 %v480, %v624
    %v769 = vmax.f32 %v481, %v625
    %v770 = vmul.f32 %v626, 1.442695
    %v771 = vpow.pop %v770
    %v772 = vmul.f32 %v627, 1.442695
    %v773 = vpow.pop %v772
    %v774 = vmul.f32 %v628, 1.442695
    %v775 = vpow.pop %v774
    %v776 = vmul.f32 %v629, 1.442695
    %v777 = vpow.pop %v776
    %v778 = vmul.f32 %v630, 1.442695
    %v779 = vpow.pop %v778
    %v780 = vmul.f32 %v631, 1.442695
    %v781 = vpow.pop %v780
    %v782 = vmul.f32 %v632, 1.442695
    %v783 = vpow.pop %v782
    %v784 = vmul.f32 %v633, 1.442695
    %v785 = vpow.pop %v784
    %v786 = vmul.f32 %v634, 1.442695
    %v787 = vpow.pop %v786
    %v788 = vmul.f32 %v635, 1.442695
    %v789 = vpow.pop %v788
    %v790 = vmul.f32 %v636, 1.442695
    %v791 = vpow.pop %v790
    %v792 = vmul.f32 %v637, 1.442695
    %v793 = vpow.pop %v792
    %v794 = vmul.f32 %v638, 1.442695
    %v795 = vpow.pop %v794
    %v796 = vmul.f32 %v639, 1.442695
    %v797 = vpow.pop %v796
    %v798 = vmul.f32 %v640, 1.442695
    %v799 = vpow.pop %v798
    %v800 = vmul.f32 %v641, 1.442695
    %v801 = vpow.pop %v800
    %v802 = vmul.f32 %v642, 1.442695
    %v803 = vpow.pop %v802
    %v804 = vmul.f32 %v643, 1.442695
    %v805 = vpow.pop %v804
    %v806 = vmul.f32 %v644, 1.442695
    %v807 = vpow.pop %v806
    %v808 = vmul.f32 %v645, 1.442695
    %v809 = vpow.pop %v808
    %v810 = vmul.f32 %v646, 1.442695
    %v811 = vpow.pop %v810
    %v812 = vmul.f32 %v647, 1.442695
    %v813 = vpow.pop %v812
    %v814 = vmul.f32 %v648, 1.442695
    %v815 = vpow.pop %v814
    %v816 = vmul.f32 %v649, 1.442695
    %v817 = vpow.pop %v816
    %v818 = vmul.f32 %v650, 1.442695
    %v819 = vpow.pop %v818
    %v820 = vmul.f32 %v651, 1.442695
    %v821 = vpow.pop %v820
    %v822 = vmul.f32 %v652, 1.442695
    %v823 = vpow.pop %v822
    %v824 = vmul.f32 %v653, 1.442695
    %v825 = vpow.pop %v824
    %v826 = vmul.f32 %v654, 1.442695
    %v827 = vpow.pop %v826
    %v828 = vmul.f32 %v655, 1.442695
    %v829 = vpow.pop %v828
    %v830 = vmul.f32 %v656, 1.442695
    %v831 = vpow.pop %v830
    %v832 = vmul.f32 %v657, 1.442695
    %v833 = vpow.pop %v832
    %v834 = vmul.f32 %v658, 1.442695
    %v835 = vpow.pop %v834
    %v836 = vmul.f32 %v659, 1.442695
    %v837 = vpow.pop %v836
    %v838 = vmul.f32 %v660, 1.442695
    %v839 = vpow.pop %v838
    %v840 = vmul.f32 %v661, 1.442695
    %v841 = vpow.pop %v840
    %v842 = vmul.f32 %v662, 1.442695
    %v843 = vpow.pop %v842
    %v844 = vmul.f32 %v663, 1.442695
    %v845 = vpow.pop %v844
    %v846 = vmul.f32 %v664, 1.442695
    %v847 = vpow.pop %v846
    %v848 = vmul.f32 %v665, 1.442695
    %v849 = vpow.pop %v848
    %v850 = vmul.f32 %v666, 1.442695
    %v851 = vpow.pop %v850
    %v852 = vmul.f32 %v667, 1.442695
    %v853 = vpow.pop %v852
    %v854 = vmul.f32 %v668, 1.442695
    %v855 = vpow.pop %v854
    %v856 = vmul.f32 %v669, 1.442695
    %v857 = vpow.pop %v856
    %v858 = vmul.f32 %v670, 1.442695
    %v859 = vpow.pop %v858
    %v860 = vmul.f32 %v671, 1.442695
    %v861 = vpow.pop %v860
    %v862 = vmul.f32 %v672, 1.442695
    %v863 = vpow.pop %v862
    %v864 = vmul.f32 %v673, 1.442695
    %v865 = vpow.pop %v864
    %v866 = vmul.f32 %v674, 1.442695
    %v867 = vpow.pop %v866
    %v868 = vmul.f32 %v675, 1.442695
    %v869 = vpow.pop %v868
    %v870 = vmul.f32 %v676, 1.442695
    %v871 = vpow.pop %v870
    %v872 = vmul.f32 %v677, 1.442695
    %v873 = vpow.pop %v872
    %v874 = vmul.f32 %v678, 1.442695
    %v875 = vpow.pop %v874
    %v876 = vmul.f32 %v679, 1.442695
    %v877 = vpow.pop %v876
    %v878 = vmul.f32 %v680, 1.442695
    %v879 = vpow.pop %v878
    %v880 = vmul.f32 %v681, 1.442695
    %v881 = vpow.pop %v880
    %v882 = vmul.f32 %v682, 1.442695
    %v883 = vpow.pop %v882
    %v884 = vmul.f32 %v683, 1.442695
    %v885 = vpow.pop %v884
    %v886 = vmul.f32 %v684, 1.442695
    %v887 = vpow.pop %v886
    %v888 = vmul.f32 %v685, 1.442695
    %v889 = vpow.pop %v888
    %v890 = vmul.f32 %v686, 1.442695
    %v891 = vpow.pop %v890
    %v892 = vmul.f32 %v687, 1.442695
    %v893 = vpow.pop %v892
    %v894 = vmul.f32 %v688, 1.442695
    %v895 = vpow.pop %v894
    %v896 = vmul.f32 %v689, 1.442695
    %v897 = vpow.pop %v896
    %v898 = vmul.f32 %v690, 1.442695
    %v899 = vpow.pop %v898
    %v900 = vmul.f32 %v691, 1.442695
    %v901 = vpow.pop %v900
    %v902 = vmul.f32 %v692, 1.442695
    %v903 = vpow.pop %v902
    %v904 = vmul.f32 %v693, 1.442695
    %v905 = vpow.pop %v904
    %v906 = vmul.f32 %v694, 1.442695
    %v907 = vpow.pop %v906
    %v908 = vmul.f32 %v695, 1.442695
    %v909 = vpow.pop %v908
    %v910 = vmul.f32 %v696, 1.442695
    %v911 = vpow.pop %v910
    %v912 = vmul.f32 %v697, 1.442695
    %v913 = vpow.pop %v912
    %v914 = vmul.f32 %v698, 1.442695
    %v915 = vpow.pop %v914
    %v916 = vmul.f32 %v699, 1.442695
    %v917 = vpow.pop %v916
    %v918 = vmul.f32 %v700, 1.442695
    %v919 = vpow.pop %v918
    %v920 = vmul.f32 %v701, 1.442695
    %v921 = vpow.pop %v920
    %v922 = vmul.f32 %v702, 1.442695
    %v923 = vpow.pop %v922
    %v924 = vmul.f32 %v703, 1.442695
    %v925 = vpow.pop %v924
    %v926 = vmul.f32 %v704, 1.442695
    %v927 = vpow.pop %v926
    %v928 = vmul.f32 %v705, 1.442695
    %v929 = vpow.pop %v928
    %v930 = vmul.f32 %v706, 1.442695
    %v931 = vpow.pop %v930
    %v932 = vmul.f32 %v707, 1.442695
    %v933 = vpow.pop %v932
    %v934 = vmul.f32 %v708, 1.442695
    %v935 = vpow.pop %v934
    %v936 = vmul.f32 %v709, 1.442695
    %v937 = vpow.pop %v936
    %v938 = vmul.f32 %v710, 1.442695
    %v939 = vpow.pop %v938
    %v940 = vmul.f32 %v711, 1.442695
    %v941 = vpow.pop %v940
    %v942 = vmul.f32 %v712, 1.442695
    %v943 = vpow.pop %v942
    %v944 = vmul.f32 %v713, 1.442695
    %v945 = vpow.pop %v944
    %v946 = vmul.f32 %v714, 1.442695
    %v947 = vpow.pop %v946
    %v948 = vmul.f32 %v715, 1.442695
    %v949 = vpow.pop %v948
    %v950 = vmul.f32 %v716, 1.442695
    %v951 = vpow.pop %v950
    %v952 = vmul.f32 %v717, 1.442695
    %v953 = vpow.pop %v952
    %v954 = vmul.f32 %v718, 1.442695
    %v955 = vpow.pop %v954
    %v956 = vmul.f32 %v719, 1.442695
    %v957 = vpow.pop %v956
    %v958 = vmul.f32 %v720, 1.442695
    %v959 = vpow.pop %v958
    %v960 = vmul.f32 %v721, 1.442695
    %v961 = vpow.pop %v960
    %v962 = vmul.f32 %v722, 1.442695
    %v963 = vpow.pop %v962
    %v964 = vmul.f32 %v723, 1.442695
    %v965 = vpow.pop %v964
    %v966 = vmul.f32 %v724, 1.442695
    %v967 = vpow.pop %v966
    %v968 = vmul.f32 %v725, 1.442695
    %v969 = vpow.pop %v968
    %v970 = vmul.f32 %v726, 1.442695
    %v971 = vpow.pop %v970
    %v972 = vmul.f32 %v727, 1.442695
    %v973 = vpow.pop %v972
    %v974 = vmul.f32 %v728, 1.442695
    %v975 = vpow.pop %v974
    %v976 = vmul.f32 %v729, 1.442695
    %v977 = vpow.pop %v976
    %v978 = vmul.f32 %v730, 1.442695
    %v979 = vpow.pop %v978
    %v980 = vmul.f32 %v731, 1.442695
    %v981 = vpow.pop %v980
    %v982 = vmul.f32 %v732, 1.442695
    %v983 = vpow.pop %v982
    %v984 = vmul.f32 %v733, 1.442695
    %v985 = vpow.pop %v984
    %v986 = vmul.f32 %v734, 1.442695
    %v987 = vpow.pop %v986
    %v988 = vmul.f32 %v735, 1.442695
    %v989 = vpow.pop %v988
    %v990 = vmul.f32 %v736, 1.442695
    %v991 = vpow.pop %v990
    %v992 = vmul.f32 %v737, 1.442695
    %v993 = vpow.pop %v992
    %v994 = vmul.f32 %v738, 1.442695
    %v995 = vpow.pop %v994
    %v996 = vmul.f32 %v739, 1.442695
    %v997 = vpow.pop %v996
    %v998 = vmul.f32 %v740, 1.442695
    %v999 = vpow.pop %v998
    %v1000 = vmul.f32 %v741, 1.442695
    %v1001 = vpow.pop %v1000
    %v1002 = vmul.f32 %v742, 1.442695
    %v1003 = vpow.pop %v1002
    %v1004 = vmul.f32 %v743, 1.442695
    %v1005 = vpow.pop %v1004
    %v1006 = vmul.f32 %v744, 1.442695
    %v1007 = vpow.pop %v1006
    %v1008 = vmul.f32 %v745, 1.442695
    %v1009 = vpow.pop %v1008
    %v1010 = vmul.f32 %v746, 1.442695
    %v1011 = vpow.pop %v1010
    %v1012 = vmul.f32 %v747, 1.442695
    %v1013 = vpow.pop %v1012
    %v1014 = vmul.f32 %v748, 1.442695
    %v1015 = vpow.pop %v1014
    %v1016 = vmul.f32 %v749, 1.442695
    %v1017 = vpow.pop %v1016
    %v1018 = vmul.f32 %v750, 1.442695
    %v1019 = vpow.pop %v1018
    %v1020 = vmul.f32 %v751, 1.442695
    %v1021 = vpow.pop %v1020
    %v1022 = vmul.f32 %v752, 1.442695
    %v1023 = vpow.pop %v1022
    %v1024 = vmul.f32 %v753, 1.442695
    %v1025 = vpow.pop %v1024
    %v1026 = vmul.f32 %v754, 1.442695
    %v1027 = vpow.pop %v1026
    %v1028 = vmul.f32 %v755, 1.442695
    %v1029 = vpow.pop %v1028
    %v1030 = vmul.f32 %v756, 1.442695
    %v1031 = vpow.pop %v1030
    %v1032 = vmul.f32 %v757, 1.442695
    %v1033 = vpow.pop %v1032
    %v1034 = vmul.f32 %v758, 1.442695
    %v1035 = vpow.pop %v1034
    %v1036 = vmul.f32 %v759, 1.442695
    %v1037 = vpow.pop %v1036
    %v1038 = vmul.f32 %v760, 1.442695
    %v1039 = vpow.pop %v1038
    %v1040 = vmul.f32 %v761, 1.442695
    %v1041 = vpow.pop %v1040
    %v1042 = vmul.f32 %v762, 1.442695
    %v1043 = vpow.pop %v1042
    %v1044 = vmul.f32 %v763, 1.442695
    %v1045 = vpow.pop %v1044
    %v1046 = vmul.f32 %v764, 1.442695
    %v1047 = vpow.pop %v1046
    %v1048 = vmul.f32 %v765, 1.442695
    %v1049 = vpow.pop %v1048
    %v1050 = vmul.f32 %v766, 1.442695
    %v1051 = vpow.pop %v1050
    %v1052 = vmul.f32 %v767, 1.442695
    %v1053 = vpow.pop %v1052
    %v1054 = vmul.f32 %v768, 1.442695
    %v1055 = vpow.pop %v1054
    %v1056 = vmul.f32 %v769, 1.442695
    %v1057 = vpow.pop %v1056
    %v1058 = vld [vmem:[%s3] sm:$0xff]
    %v1059 = vld [vmem:[%s3 + $0x8] sm:$0xff]
    %v1060 = vld [vmem:[%s3 + $0x10] sm:$0xff]
    %v1061 = vld [vmem:[%s3 + $0x18] sm:$0xff]
    %v1062 = vld [vmem:[%s3 + $0x20] sm:$0xff]
    %v1063 = vld [vmem:[%s3 + $0x28] sm:$0xff]
    %v1064 = vld [vmem:[%s3 + $0x30] sm:$0xff]
    %v1065 = vld [vmem:[%s3 + $0x38] sm:$0xff]
    %v1066 = vld [vmem:[%s3 + $0x40] sm:$0xff]
    %v1067 = vld [vmem:[%s3 + $0x48] sm:$0xff]
    %v1068 = vld [vmem:[%s3 + $0x50] sm:$0xff]
    %v1069 = vld [vmem:[%s3 + $0x58] sm:$0xff]
    %v1070 = vld [vmem:[%s3 + $0x60] sm:$0xff]
    %v1071 = vld [vmem:[%s3 + $0x68] sm:$0xff]
    %v1072 = vld [vmem:[%s3 + $0x70] sm:$0xff]
    %v1073 = vld [vmem:[%s3 + $0x78] sm:$0xff]
    %v1074 = vld [vmem:[%s3 + $0x80] sm:$0xff]
    %v1075 = vld [vmem:[%s3 + $0x88] sm:$0xff]
    %v1076 = vld [vmem:[%s3 + $0x90] sm:$0xff]
    %v1077 = vld [vmem:[%s3 + $0x98] sm:$0xff]
    %v1078 = vld [vmem:[%s3 + $0xa0] sm:$0xff]
    %v1079 = vld [vmem:[%s3 + $0xa8] sm:$0xff]
    %v1080 = vld [vmem:[%s3 + $0xb0] sm:$0xff]
    %v1081 = vld [vmem:[%s3 + $0xb8] sm:$0xff]
    %v1082 = vld [vmem:[%s3 + $0xc0] sm:$0xff]
    %v1083 = vld [vmem:[%s3 + $0xc8] sm:$0xff]
    %v1084 = vld [vmem:[%s3 + $0xd0] sm:$0xff]
    %v1085 = vld [vmem:[%s3 + $0xd8] sm:$0xff]
    %v1086 = vld [vmem:[%s3 + $0xe0] sm:$0xff]
    %v1087 = vld [vmem:[%s3 + $0xe8] sm:$0xff]
    %v1088 = vld [vmem:[%s3 + $0xf0] sm:$0xff]
    %v1089 = vld [vmem:[%s3 + $0xf8] sm:$0xff]
    %v1090 = vld [vmem:[%s3 + $0x100] sm:$0xff]
    %v1091 = vld [vmem:[%s3 + $0x108] sm:$0xff]
    %v1092 = vld [vmem:[%s3 + $0x110] sm:$0xff]
    %v1093 = vld [vmem:[%s3 + $0x118] sm:$0xff]
    %v1094 = vunpack.c.0.s8 %v1058
    %v1095 = vunpack.c.0.s8 %v1059
    %v1096 = vunpack.c.0.s8 %v1060
    %v1097 = vunpack.c.1.s8 %v1058
    %v1098 = vunpack.c.1.s8 %v1059
    %v1099 = vunpack.c.1.s8 %v1060
    %v1100 = vunpack.c.2.s8 %v1058
    %v1101 = vunpack.c.2.s8 %v1059
    %v1102 = vunpack.c.2.s8 %v1060
    %v1103 = vunpack.c.3.s8 %v1058
    %v1104 = vunpack.c.3.s8 %v1059
    %v1105 = vunpack.c.3.s8 %v1060
    %v1106 = vunpack.c.0.s8 %v1061
    %v1107 = vunpack.c.0.s8 %v1062
    %v1108 = vunpack.c.0.s8 %v1063
    %v1109 = vunpack.c.1.s8 %v1061
    %v1110 = vunpack.c.1.s8 %v1062
    %v1111 = vunpack.c.1.s8 %v1063
    %v1112 = vunpack.c.2.s8 %v1061
    %v1113 = vunpack.c.2.s8 %v1062
    %v1114 = vunpack.c.2.s8 %v1063
    %v1115 = vunpack.c.3.s8 %v1061
    %v1116 = vunpack.c.3.s8 %v1062
    %v1117 = vunpack.c.3.s8 %v1063
    %v1118 = vunpack.c.0.s8 %v1064
    %v1119 = vunpack.c.0.s8 %v1065
    %v1120 = vunpack.c.0.s8 %v1066
    %v1121 = vunpack.c.1.s8 %v1064
    %v1122 = vunpack.c.1.s8 %v1065
    %v1123 = vunpack.c.1.s8 %v1066
    %v1124 = vunpack.c.2.s8 %v1064
    %v1125 = vunpack.c.2.s8 %v1065
    %v1126 = vunpack.c.2.s8 %v1066
    %v1127 = vunpack.c.3.s8 %v1064
    %v1128 = vunpack.c.3.s8 %v1065
    %v1129 = vunpack.c.3.s8 %v1066
    %v1130 = vunpack.c.0.s8 %v1067
    %v1131 = vunpack.c.0.s8 %v1068
    %v1132 = vunpack.c.0.s8 %v1069
    %v1133 = vunpack.c.1.s8 %v1067
    %v1134 = vunpack.c.1.s8 %v1068
    %v1135 = vunpack.c.1.s8 %v1069
    %v1136 = vunpack.c.2.s8 %v1067
    %v1137 = vunpack.c.2.s8 %v1068
    %v1138 = vunpack.c.2.s8 %v1069
    %v1139 = vunpack.c.3.s8 %v1067
    %v1140 = vunpack.c.3.s8 %v1068
    %v1141 = vunpack.c.3.s8 %v1069
    %v1142 = vunpack.c.0.s8 %v1070
    %v1143 = vunpack.c.0.s8 %v1071
    %v1144 = vunpack.c.0.s8 %v1072
    %v1145 = vunpack.c.1.s8 %v1070
    %v1146 = vunpack.c.1.s8 %v1071
    %v1147 = vunpack.c.1.s8 %v1072
    %v1148 = vunpack.c.2.s8 %v1070
    %v1149 = vunpack.c.2.s8 %v1071
    %v1150 = vunpack.c.2.s8 %v1072
    %v1151 = vunpack.c.3.s8 %v1070
    %v1152 = vunpack.c.3.s8 %v1071
    %v1153 = vunpack.c.3.s8 %v1072
    %v1154 = vunpack.c.0.s8 %v1073
    %v1155 = vunpack.c.0.s8 %v1074
    %v1156 = vunpack.c.0.s8 %v1075
    %v1157 = vunpack.c.1.s8 %v1073
    %v1158 = vunpack.c.1.s8 %v1074
    %v1159 = vunpack.c.1.s8 %v1075
    %v1160 = vunpack.c.2.s8 %v1073
    %v1161 = vunpack.c.2.s8 %v1074
    %v1162 = vunpack.c.2.s8 %v1075
    %v1163 = vunpack.c.3.s8 %v1073
    %v1164 = vunpack.c.3.s8 %v1074
    %v1165 = vunpack.c.3.s8 %v1075
    %v1166 = vunpack.c.0.s8 %v1076
    %v1167 = vunpack.c.0.s8 %v1077
    %v1168 = vunpack.c.0.s8 %v1078
    %v1169 = vunpack.c.1.s8 %v1076
    %v1170 = vunpack.c.1.s8 %v1077
    %v1171 = vunpack.c.1.s8 %v1078
    %v1172 = vunpack.c.2.s8 %v1076
    %v1173 = vunpack.c.2.s8 %v1077
    %v1174 = vunpack.c.2.s8 %v1078
    %v1175 = vunpack.c.3.s8 %v1076
    %v1176 = vunpack.c.3.s8 %v1077
    %v1177 = vunpack.c.3.s8 %v1078
    %v1178 = vunpack.c.0.s8 %v1079
    %v1179 = vunpack.c.0.s8 %v1080
    %v1180 = vunpack.c.0.s8 %v1081
    %v1181 = vunpack.c.1.s8 %v1079
    %v1182 = vunpack.c.1.s8 %v1080
    %v1183 = vunpack.c.1.s8 %v1081
    %v1184 = vunpack.c.2.s8 %v1079
    %v1185 = vunpack.c.2.s8 %v1080
    %v1186 = vunpack.c.2.s8 %v1081
    %v1187 = vunpack.c.3.s8 %v1079
    %v1188 = vunpack.c.3.s8 %v1080
    %v1189 = vunpack.c.3.s8 %v1081
    %v1190 = vunpack.c.0.s8 %v1082
    %v1191 = vunpack.c.0.s8 %v1083
    %v1192 = vunpack.c.0.s8 %v1084
    %v1193 = vunpack.c.1.s8 %v1082
    %v1194 = vunpack.c.1.s8 %v1083
    %v1195 = vunpack.c.1.s8 %v1084
    %v1196 = vunpack.c.2.s8 %v1082
    %v1197 = vunpack.c.2.s8 %v1083
    %v1198 = vunpack.c.2.s8 %v1084
    %v1199 = vunpack.c.3.s8 %v1082
    %v1200 = vunpack.c.3.s8 %v1083
    %v1201 = vunpack.c.3.s8 %v1084
    %v1202 = vunpack.c.0.s8 %v1085
    %v1203 = vunpack.c.0.s8 %v1086
    %v1204 = vunpack.c.0.s8 %v1087
    %v1205 = vunpack.c.1.s8 %v1085
    %v1206 = vunpack.c.1.s8 %v1086
    %v1207 = vunpack.c.1.s8 %v1087
    %v1208 = vunpack.c.2.s8 %v1085
    %v1209 = vunpack.c.2.s8 %v1086
    %v1210 = vunpack.c.2.s8 %v1087
    %v1211 = vunpack.c.3.s8 %v1085
    %v1212 = vunpack.c.3.s8 %v1086
    %v1213 = vunpack.c.3.s8 %v1087
    %v1214 = vunpack.c.0.s8 %v1088
    %v1215 = vunpack.c.0.s8 %v1089
    %v1216 = vunpack.c.0.s8 %v1090
    %v1217 = vunpack.c.1.s8 %v1088
    %v1218 = vunpack.c.1.s8 %v1089
    %v1219 = vunpack.c.1.s8 %v1090
    %v1220 = vunpack.c.2.s8 %v1088
    %v1221 = vunpack.c.2.s8 %v1089
    %v1222 = vunpack.c.2.s8 %v1090
    %v1223 = vunpack.c.3.s8 %v1088
    %v1224 = vunpack.c.3.s8 %v1089
    %v1225 = vunpack.c.3.s8 %v1090
    %v1226 = vunpack.c.0.s8 %v1091
    %v1227 = vunpack.c.0.s8 %v1092
    %v1228 = vunpack.c.0.s8 %v1093
    %v1229 = vunpack.c.1.s8 %v1091
    %v1230 = vunpack.c.1.s8 %v1092
    %v1231 = vunpack.c.1.s8 %v1093
    %v1232 = vunpack.c.2.s8 %v1091
    %v1233 = vunpack.c.2.s8 %v1092
    %v1234 = vunpack.c.2.s8 %v1093
    %v1235 = vunpack.c.3.s8 %v1091
    %v1236 = vunpack.c.3.s8 %v1092
    %v1237 = vunpack.c.3.s8 %v1093
    %v1238 = vcvt.s32.f32 %v1094
    %v1239 = vcvt.s32.f32 %v1095
    %v1240 = vcvt.s32.f32 %v1096
    %v1241 = vcvt.s32.f32 %v1097
    %v1242 = vcvt.s32.f32 %v1098
    %v1243 = vcvt.s32.f32 %v1099
    %v1244 = vcvt.s32.f32 %v1100
    %v1245 = vcvt.s32.f32 %v1101
    %v1246 = vcvt.s32.f32 %v1102
    %v1247 = vcvt.s32.f32 %v1103
    %v1248 = vcvt.s32.f32 %v1104
    %v1249 = vcvt.s32.f32 %v1105
    %v1250 = vcvt.s32.f32 %v1106
    %v1251 = vcvt.s32.f32 %v1107
    %v1252 = vcvt.s32.f32 %v1108
    %v1253 = vcvt.s32.f32 %v1109
    %v1254 = vcvt.s32.f32 %v1110
    %v1255 = vcvt.s32.f32 %v1111
    %v1256 = vcvt.s32.f32 %v1112
    %v1257 = vcvt.s32.f32 %v1113
    %v1258 = vcvt.s32.f32 %v1114
    %v1259 = vcvt.s32.f32 %v1115
    %v1260 = vcvt.s32.f32 %v1116
    %v1261 = vcvt.s32.f32 %v1117
    %v1262 = vcvt.s32.f32 %v1118
    %v1263 = vcvt.s32.f32 %v1119
    %v1264 = vcvt.s32.f32 %v1120
    %v1265 = vcvt.s32.f32 %v1121
    %v1266 = vcvt.s32.f32 %v1122
    %v1267 = vcvt.s32.f32 %v1123
    %v1268 = vcvt.s32.f32 %v1124
    %v1269 = vcvt.s32.f32 %v1125
    %v1270 = vcvt.s32.f32 %v1126
    %v1271 = vcvt.s32.f32 %v1127
    %v1272 = vcvt.s32.f32 %v1128
    %v1273 = vcvt.s32.f32 %v1129
    %v1274 = vcvt.s32.f32 %v1130
    %v1275 = vcvt.s32.f32 %v1131
    %v1276 = vcvt.s32.f32 %v1132
    %v1277 = vcvt.s32.f32 %v1133
    %v1278 = vcvt.s32.f32 %v1134
    %v1279 = vcvt.s32.f32 %v1135
    %v1280 = vcvt.s32.f32 %v1136
    %v1281 = vcvt.s32.f32 %v1137
    %v1282 = vcvt.s32.f32 %v1138
    %v1283 = vcvt.s32.f32 %v1139
    %v1284 = vcvt.s32.f32 %v1140
    %v1285 = vcvt.s32.f32 %v1141
    %v1286 = vcvt.s32.f32 %v1142
    %v1287 = vcvt.s32.f32 %v1143
    %v1288 = vcvt.s32.f32 %v1144
    %v1289 = vcvt.s32.f32 %v1145
    %v1290 = vcvt.s32.f32 %v1146
    %v1291 = vcvt.s32.f32 %v1147
    %v1292 = vcvt.s32.f32 %v1148
    %v1293 = vcvt.s32.f32 %v1149
    %v1294 = vcvt.s32.f32 %v1150
    %v1295 = vcvt.s32.f32 %v1151
    %v1296 = vcvt.s32.f32 %v1152
    %v1297 = vcvt.s32.f32 %v1153
    %v1298 = vcvt.s32.f32 %v1154
    %v1299 = vcvt.s32.f32 %v1155
    %v1300 = vcvt.s32.f32 %v1156
    %v1301 = vcvt.s32.f32 %v1157
    %v1302 = vcvt.s32.f32 %v1158
    %v1303 = vcvt.s32.f32 %v1159
    %v1304 = vcvt.s32.f32 %v1160
    %v1305 = vcvt.s32.f32 %v1161
    %v1306 = vcvt.s32.f32 %v1162
    %v1307 = vcvt.s32.f32 %v1163
    %v1308 = vcvt.s32.f32 %v1164
    %v1309 = vcvt.s32.f32 %v1165
    %v1310 = vcvt.s32.f32 %v1166
    %v1311 = vcvt.s32.f32 %v1167
    %v1312 = vcvt.s32.f32 %v1168
    %v1313 = vcvt.s32.f32 %v1169
    %v1314 = vcvt.s32.f32 %v1170
    %v1315 = vcvt.s32.f32 %v1171
    %v1316 = vcvt.s32.f32 %v1172
    %v1317 = vcvt.s32.f32 %v1173
    %v1318 = vcvt.s32.f32 %v1174
    %v1319 = vcvt.s32.f32 %v1175
    %v1320 = vcvt.s32.f32 %v1176
    %v1321 = vcvt.s32.f32 %v1177
    %v1322 = vcvt.s32.f32 %v1178
    %v1323 = vcvt.s32.f32 %v1179
    %v1324 = vcvt.s32.f32 %v1180
    %v1325 = vcvt.s32.f32 %v1181
    %v1326 = vcvt.s32.f32 %v1182
    %v1327 = vcvt.s32.f32 %v1183
    %v1328 = vcvt.s32.f32 %v1184
    %v1329 = vcvt.s32.f32 %v1185
    %v1330 = vcvt.s32.f32 %v1186
    %v1331 = vcvt.s32.f32 %v1187
    %v1332 = vcvt.s32.f32 %v1188
    %v1333 = vcvt.s32.f32 %v1189
    %v1334 = vcvt.s32.f32 %v1190
    %v1335 = vcvt.s32.f32 %v1191
    %v1336 = vcvt.s32.f32 %v1192
    %v1337 = vcvt.s32.f32 %v1193
    %v1338 = vcvt.s32.f32 %v1194
    %v1339 = vcvt.s32.f32 %v1195
    %v1340 = vcvt.s32.f32 %v1196
    %v1341 = vcvt.s32.f32 %v1197
    %v1342 = vcvt.s32.f32 %v1198
    %v1343 = vcvt.s32.f32 %v1199
    %v1344 = vcvt.s32.f32 %v1200
    %v1345 = vcvt.s32.f32 %v1201
    %v1346 = vcvt.s32.f32 %v1202
    %v1347 = vcvt.s32.f32 %v1203
    %v1348 = vcvt.s32.f32 %v1204
    %v1349 = vcvt.s32.f32 %v1205
    %v1350 = vcvt.s32.f32 %v1206
    %v1351 = vcvt.s32.f32 %v1207
    %v1352 = vcvt.s32.f32 %v1208
    %v1353 = vcvt.s32.f32 %v1209
    %v1354 = vcvt.s32.f32 %v1210
    %v1355 = vcvt.s32.f32 %v1211
    %v1356 = vcvt.s32.f32 %v1212
    %v1357 = vcvt.s32.f32 %v1213
    %v1358 = vcvt.s32.f32 %v1214
    %v1359 = vcvt.s32.f32 %v1215
    %v1360 = vcvt.s32.f32 %v1216
    %v1361 = vcvt.s32.f32 %v1217
    %v1362 = vcvt.s32.f32 %v1218
    %v1363 = vcvt.s32.f32 %v1219
    %v1364 = vcvt.s32.f32 %v1220
    %v1365 = vcvt.s32.f32 %v1221
    %v1366 = vcvt.s32.f32 %v1222
    %v1367 = vcvt.s32.f32 %v1223
    %v1368 = vcvt.s32.f32 %v1224
    %v1369 = vcvt.s32.f32 %v1225
    %v1370 = vcvt.s32.f32 %v1226
    %v1371 = vcvt.s32.f32 %v1227
    %v1372 = vcvt.s32.f32 %v1228
    %v1373 = vcvt.s32.f32 %v1229
    %v1374 = vcvt.s32.f32 %v1230
    %v1375 = vcvt.s32.f32 %v1231
    %v1376 = vcvt.s32.f32 %v1232
    %v1377 = vcvt.s32.f32 %v1233
    %v1378 = vcvt.s32.f32 %v1234
    %v1379 = vcvt.s32.f32 %v1235
    %v1380 = vcvt.s32.f32 %v1236
    %v1381 = vcvt.s32.f32 %v1237
    %v1382 = vmul.f32 %v1238, %v771
    %v1383 = vmul.f32 %v1239, %v773
    %v1384 = vmul.f32 %v1240, %v775
    %v1385 = vmul.f32 %v1241, %v777
    %v1386 = vmul.f32 %v1242, %v779
    %v1387 = vmul.f32 %v1243, %v781
    %v1388 = vmul.f32 %v1244, %v783
    %v1389 = vmul.f32 %v1245, %v785
    %v1390 = vmul.f32 %v1246, %v787
    %v1391 = vmul.f32 %v1247, %v789
    %v1392 = vmul.f32 %v1248, %v791
    %v1393 = vmul.f32 %v1249, %v793
    %v1394 = vmul.f32 %v1250, %v795
    %v1395 = vmul.f32 %v1251, %v797
    %v1396 = vmul.f32 %v1252, %v799
    %v1397 = vmul.f32 %v1253, %v801
    %v1398 = vmul.f32 %v1254, %v803
    %v1399 = vmul.f32 %v1255, %v805
    %v1400 = vmul.f32 %v1256, %v807
    %v1401 = vmul.f32 %v1257, %v809
    %v1402 = vmul.f32 %v1258, %v811
    %v1403 = vmul.f32 %v1259, %v813
    %v1404 = vmul.f32 %v1260, %v815
    %v1405 = vmul.f32 %v1261, %v817
    %v1406 = vmul.f32 %v1262, %v819
    %v1407 = vmul.f32 %v1263, %v821
    %v1408 = vmul.f32 %v1264, %v823
    %v1409 = vmul.f32 %v1265, %v825
    %v1410 = vmul.f32 %v1266, %v827
    %v1411 = vmul.f32 %v1267, %v829
    %v1412 = vmul.f32 %v1268, %v831
    %v1413 = vmul.f32 %v1269, %v833
    %v1414 = vmul.f32 %v1270, %v835
    %v1415 = vmul.f32 %v1271, %v837
    %v1416 = vmul.f32 %v1272, %v839
    %v1417 = vmul.f32 %v1273, %v841
    %v1418 = vmul.f32 %v1274, %v843
    %v1419 = vmul.f32 %v1275, %v845
    %v1420 = vmul.f32 %v1276, %v847
    %v1421 = vmul.f32 %v1277, %v849
    %v1422 = vmul.f32 %v1278, %v851
    %v1423 = vmul.f32 %v1279, %v853
    %v1424 = vmul.f32 %v1280, %v855
    %v1425 = vmul.f32 %v1281, %v857
    %v1426 = vmul.f32 %v1282, %v859
    %v1427 = vmul.f32 %v1283, %v861
    %v1428 = vmul.f32 %v1284, %v863
    %v1429 = vmul.f32 %v1285, %v865
    %v1430 = vmul.f32 %v1286, %v867
    %v1431 = vmul.f32 %v1287, %v869
    %v1432 = vmul.f32 %v1288, %v871
    %v1433 = vmul.f32 %v1289, %v873
    %v1434 = vmul.f32 %v1290, %v875
    %v1435 = vmul.f32 %v1291, %v877
    %v1436 = vmul.f32 %v1292, %v879
    %v1437 = vmul.f32 %v1293, %v881
    %v1438 = vmul.f32 %v1294, %v883
    %v1439 = vmul.f32 %v1295, %v885
    %v1440 = vmul.f32 %v1296, %v887
    %v1441 = vmul.f32 %v1297, %v889
    %v1442 = vmul.f32 %v1298, %v891
    %v1443 = vmul.f32 %v1299, %v893
    %v1444 = vmul.f32 %v1300, %v895
    %v1445 = vmul.f32 %v1301, %v897
    %v1446 = vmul.f32 %v1302, %v899
    %v1447 = vmul.f32 %v1303, %v901
    %v1448 = vmul.f32 %v1304, %v903
    %v1449 = vmul.f32 %v1305, %v905
    %v1450 = vmul.f32 %v1306, %v907
    %v1451 = vmul.f32 %v1307, %v909
    %v1452 = vmul.f32 %v1308, %v911
    %v1453 = vmul.f32 %v1309, %v913
    %v1454 = vmul.f32 %v1310, %v915
    %v1455 = vmul.f32 %v1311, %v917
    %v1456 = vmul.f32 %v1312, %v919
    %v1457 = vmul.f32 %v1313, %v921
    %v1458 = vmul.f32 %v1314, %v923
    %v1459 = vmul.f32 %v1315, %v925
    %v1460 = vmul.f32 %v1316, %v927
    %v1461 = vmul.f32 %v1317, %v929
    %v1462 = vmul.f32 %v1318, %v931
    %v1463 = vmul.f32 %v1319, %v933
    %v1464 = vmul.f32 %v1320, %v935
    %v1465 = vmul.f32 %v1321, %v937
    %v1466 = vmul.f32 %v1322, %v939
    %v1467 = vmul.f32 %v1323, %v941
    %v1468 = vmul.f32 %v1324, %v943
    %v1469 = vmul.f32 %v1325, %v945
    %v1470 = vmul.f32 %v1326, %v947
    %v1471 = vmul.f32 %v1327, %v949
    %v1472 = vmul.f32 %v1328, %v951
    %v1473 = vmul.f32 %v1329, %v953
    %v1474 = vmul.f32 %v1330, %v955
    %v1475 = vmul.f32 %v1331, %v957
    %v1476 = vmul.f32 %v1332, %v959
    %v1477 = vmul.f32 %v1333, %v961
    %v1478 = vmul.f32 %v1334, %v963
    %v1479 = vmul.f32 %v1335, %v965
    %v1480 = vmul.f32 %v1336, %v967
    %v1481 = vmul.f32 %v1337, %v969
    %v1482 = vmul.f32 %v1338, %v971
    %v1483 = vmul.f32 %v1339, %v973
    %v1484 = vmul.f32 %v1340, %v975
    %v1485 = vmul.f32 %v1341, %v977
    %v1486 = vmul.f32 %v1342, %v979
    %v1487 = vmul.f32 %v1343, %v981
    %v1488 = vmul.f32 %v1344, %v983
    %v1489 = vmul.f32 %v1345, %v985
    %v1490 = vmul.f32 %v1346, %v987
    %v1491 = vmul.f32 %v1347, %v989
    %v1492 = vmul.f32 %v1348, %v991
    %v1493 = vmul.f32 %v1349, %v993
    %v1494 = vmul.f32 %v1350, %v995
    %v1495 = vmul.f32 %v1351, %v997
    %v1496 = vmul.f32 %v1352, %v999
    %v1497 = vmul.f32 %v1353, %v1001
    %v1498 = vmul.f32 %v1354, %v1003
    %v1499 = vmul.f32 %v1355, %v1005
    %v1500 = vmul.f32 %v1356, %v1007
    %v1501 = vmul.f32 %v1357, %v1009
    %v1502 = vmul.f32 %v1358, %v1011
    %v1503 = vmul.f32 %v1359, %v1013
    %v1504 = vmul.f32 %v1360, %v1015
    %v1505 = vmul.f32 %v1361, %v1017
    %v1506 = vmul.f32 %v1362, %v1019
    %v1507 = vmul.f32 %v1363, %v1021
    %v1508 = vmul.f32 %v1364, %v1023
    %v1509 = vmul.f32 %v1365, %v1025
    %v1510 = vmul.f32 %v1366, %v1027
    %v1511 = vmul.f32 %v1367, %v1029
    %v1512 = vmul.f32 %v1368, %v1031
    %v1513 = vmul.f32 %v1369, %v1033
    %v1514 = vmul.f32 %v1370, %v1035
    %v1515 = vmul.f32 %v1371, %v1037
    %v1516 = vmul.f32 %v1372, %v1039
    %v1517 = vmul.f32 %v1373, %v1041
    %v1518 = vmul.f32 %v1374, %v1043
    %v1519 = vmul.f32 %v1375, %v1045
    %v1520 = vmul.f32 %v1376, %v1047
    %v1521 = vmul.f32 %v1377, %v1049
    %v1522 = vmul.f32 %v1378, %v1051
    %v1523 = vmul.f32 %v1379, %v1053
    %v1524 = vmul.f32 %v1380, %v1055
    %v1525 = vmul.f32 %v1381, %v1057
    %v1526 = vpack.c.bf16 %v1385, %v1382
    %v1527 = vpack.c.bf16 %v1386, %v1383
    %v1528 = vpack.c.bf16 %v1387, %v1384
    %v1529 = vpack.c.bf16 %v1391, %v1388
    %v1530 = vpack.c.bf16 %v1392, %v1389
    %v1531 = vpack.c.bf16 %v1393, %v1390
    %v1532 = vpack.c.bf16 %v1397, %v1394
    %v1533 = vpack.c.bf16 %v1398, %v1395
    %v1534 = vpack.c.bf16 %v1399, %v1396
    %v1535 = vpack.c.bf16 %v1403, %v1400
    %v1536 = vpack.c.bf16 %v1404, %v1401
    %v1537 = vpack.c.bf16 %v1405, %v1402
    %v1538 = vpack.c.bf16 %v1409, %v1406
    %v1539 = vpack.c.bf16 %v1410, %v1407
    %v1540 = vpack.c.bf16 %v1411, %v1408
    %v1541 = vpack.c.bf16 %v1415, %v1412
    %v1542 = vpack.c.bf16 %v1416, %v1413
    %v1543 = vpack.c.bf16 %v1417, %v1414
    %v1544 = vpack.c.bf16 %v1421, %v1418
    %v1545 = vpack.c.bf16 %v1422, %v1419
    %v1546 = vpack.c.bf16 %v1423, %v1420
    %v1547 = vpack.c.bf16 %v1427, %v1424
    %v1548 = vpack.c.bf16 %v1428, %v1425
    %v1549 = vpack.c.bf16 %v1429, %v1426
    %v1550 = vpack.c.bf16 %v1433, %v1430
    %v1551 = vpack.c.bf16 %v1434, %v1431
    %v1552 = vpack.c.bf16 %v1435, %v1432
    %v1553 = vpack.c.bf16 %v1439, %v1436
    %v1554 = vpack.c.bf16 %v1440, %v1437
    %v1555 = vpack.c.bf16 %v1441, %v1438
    %v1556 = vpack.c.bf16 %v1445, %v1442
    %v1557 = vpack.c.bf16 %v1446, %v1443
    %v1558 = vpack.c.bf16 %v1447, %v1444
    %v1559 = vpack.c.bf16 %v1451, %v1448
    %v1560 = vpack.c.bf16 %v1452, %v1449
    %v1561 = vpack.c.bf16 %v1453, %v1450
    %v1562 = vpack.c.bf16 %v1457, %v1454
    %v1563 = vpack.c.bf16 %v1458, %v1455
    %v1564 = vpack.c.bf16 %v1459, %v1456
    %v1565 = vpack.c.bf16 %v1463, %v1460
    %v1566 = vpack.c.bf16 %v1464, %v1461
    %v1567 = vpack.c.bf16 %v1465, %v1462
    %v1568 = vpack.c.bf16 %v1469, %v1466
    %v1569 = vpack.c.bf16 %v1470, %v1467
    %v1570 = vpack.c.bf16 %v1471, %v1468
    %v1571 = vpack.c.bf16 %v1475, %v1472
    %v1572 = vpack.c.bf16 %v1476, %v1473
    %v1573 = vpack.c.bf16 %v1477, %v1474
    %v1574 = vpack.c.bf16 %v1481, %v1478
    %v1575 = vpack.c.bf16 %v1482, %v1479
    %v1576 = vpack.c.bf16 %v1483, %v1480
    %v1577 = vpack.c.bf16 %v1487, %v1484
    %v1578 = vpack.c.bf16 %v1488, %v1485
    %v1579 = vpack.c.bf16 %v1489, %v1486
    %v1580 = vpack.c.bf16 %v1493, %v1490
    %v1581 = vpack.c.bf16 %v1494, %v1491
    %v1582 = vpack.c.bf16 %v1495, %v1492
    %v1583 = vpack.c.bf16 %v1499, %v1496
    %v1584 = vpack.c.bf16 %v1500, %v1497
    %v1585 = vpack.c.bf16 %v1501, %v1498
    %v1586 = vpack.c.bf16 %v1505, %v1502
    %v1587 = vpack.c.bf16 %v1506, %v1503
    %v1588 = vpack.c.bf16 %v1507, %v1504
    %v1589 = vpack.c.bf16 %v1511, %v1508
    %v1590 = vpack.c.bf16 %v1512, %v1509
    %v1591 = vpack.c.bf16 %v1513, %v1510
    %v1592 = vpack.c.bf16 %v1517, %v1514
    %v1593 = vpack.c.bf16 %v1518, %v1515
    %v1594 = vpack.c.bf16 %v1519, %v1516
    %v1595 = vpack.c.bf16 %v1523, %v1520
    %v1596 = vpack.c.bf16 %v1524, %v1521
    %v1597 = vpack.c.bf16 %v1525, %v1522
    %v1598 = vld [vmem:[#allocation2] sm:$0xf]
    %v1599 = vld [vmem:[#allocation2 + $0x4] sm:$0xf]
    %v1600 = vld [vmem:[#allocation2 + $0x8] sm:$0xf]
    %v1601 = vld [vmem:[#allocation2 + $0xc] sm:$0xf]
    %v1602 = vld [vmem:[#allocation2 + $0x10] sm:$0xf]
    %v1603 = vld [vmem:[#allocation2 + $0x14] sm:$0xf]
    %v1604 = vld [vmem:[#allocation2 + $0x18] sm:$0xf]
    %v1605 = vld [vmem:[#allocation2 + $0x1c] sm:$0xf]
    %v1606 = vld [vmem:[#allocation2 + $0x20] sm:$0xf]
    %v1607 = vld [vmem:[#allocation2 + $0x24] sm:$0xf]
    %v1608 = vld [vmem:[#allocation2 + $0x28] sm:$0xf]
    %v1609 = vld [vmem:[#allocation2 + $0x2c] sm:$0xf]
    %v1610 = vld [vmem:[#allocation2 + $0x30] sm:$0xf]
    %v1611 = vld [vmem:[#allocation2 + $0x34] sm:$0xf]
    %v1612 = vld [vmem:[#allocation2 + $0x38] sm:$0xf]
    %v1613 = vld [vmem:[#allocation2 + $0x3c] sm:$0xf]
    %v1614 = vld [vmem:[#allocation2 + $0x40] sm:$0xf]
    %v1615 = vld [vmem:[#allocation2 + $0x44] sm:$0xf]
    %v1616 = vld [vmem:[#allocation2 + $0x48] sm:$0xf]
    %v1617 = vld [vmem:[#allocation2 + $0x4c] sm:$0xf]
    %v1618 = vld [vmem:[#allocation2 + $0x50] sm:$0xf]
    %v1619 = vld [vmem:[#allocation2 + $0x54] sm:$0xf]
    %v1620 = vld [vmem:[#allocation2 + $0x58] sm:$0xf]
    %v1621 = vld [vmem:[#allocation2 + $0x5c] sm:$0xf]
    %v1622 = vld [vmem:[#allocation2 + $0x60] sm:$0xf]
    %v1623 = vld [vmem:[#allocation2 + $0x64] sm:$0xf]
    %v1624 = vld [vmem:[#allocation2 + $0x68] sm:$0xf]
    %v1625 = vld [vmem:[#allocation2 + $0x6c] sm:$0xf]
    %v1626 = vld [vmem:[#allocation2 + $0x70] sm:$0xf]
    %v1627 = vld [vmem:[#allocation2 + $0x74] sm:$0xf]
    %v1628 = vld [vmem:[#allocation2 + $0x78] sm:$0xf]
    %v1629 = vld [vmem:[#allocation2 + $0x7c] sm:$0xf]
    %v1630 = vld [vmem:[#allocation2 + $0x80] sm:$0xf]
    %v1631 = vld [vmem:[#allocation2 + $0x84] sm:$0xf]
    %v1632 = vld [vmem:[#allocation2 + $0x88] sm:$0xf]
    %v1633 = vld [vmem:[#allocation2 + $0x8c] sm:$0xf]
    %v1634 = vld [vmem:[#allocation2 + $0x90] sm:$0xf]
    %v1635 = vld [vmem:[#allocation2 + $0x94] sm:$0xf]
    %v1636 = vld [vmem:[#allocation2 + $0x98] sm:$0xf]
    %v1637 = vld [vmem:[#allocation2 + $0x9c] sm:$0xf]
    %v1638 = vld [vmem:[#allocation2 + $0xa0] sm:$0xf]
    %v1639 = vld [vmem:[#allocation2 + $0xa4] sm:$0xf]
    %v1640 = vld [vmem:[#allocation2 + $0xa8] sm:$0xf]
    %v1641 = vld [vmem:[#allocation2 + $0xac] sm:$0xf]
    %v1642 = vld [vmem:[#allocation2 + $0xb0] sm:$0xf]
    %v1643 = vld [vmem:[#allocation2 + $0xb4] sm:$0xf]
    %v1644 = vld [vmem:[#allocation2 + $0xb8] sm:$0xf]
    %v1645 = vld [vmem:[#allocation2 + $0xbc] sm:$0xf]
    %v1694 = vunpack.c.l.b16 %v1598
    %v1695 = vunpack.c.l.b16 %v1599
    %v1696 = vunpack.c.l.b16 %v1600
    %v1697 = vunpack.c.l.b16 %v1601
    %v1698 = vunpack.c.l.b16 %v1602
    %v1699 = vunpack.c.l.b16 %v1603
    %v1700 = vunpack.c.l.b16 %v1604
    %v1701 = vunpack.c.l.b16 %v1605
    %v1702 = vunpack.c.l.b16 %v1606
    %v1703 = vunpack.c.l.b16 %v1607
    %v1704 = vunpack.c.l.b16 %v1608
    %v1705 = vunpack.c.l.b16 %v1609
    %v1706 = vunpack.c.l.b16 %v1610
    %v1707 = vunpack.c.l.b16 %v1611
    %v1708 = vunpack.c.l.b16 %v1612
    %v1709 = vunpack.c.l.b16 %v1613
    %v1710 = vunpack.c.l.b16 %v1614
    %v1711 = vunpack.c.l.b16 %v1615
    %v1712 = vunpack.c.l.b16 %v1616
    %v1713 = vunpack.c.l.b16 %v1617
    %v1714 = vunpack.c.l.b16 %v1618
    %v1715 = vunpack.c.l.b16 %v1619
    %v1716 = vunpack.c.l.b16 %v1620
    %v1717 = vunpack.c.l.b16 %v1621
    %v1718 = vunpack.c.l.b16 %v1622
    %v1719 = vunpack.c.l.b16 %v1623
    %v1720 = vunpack.c.l.b16 %v1624
    %v1721 = vunpack.c.l.b16 %v1625
    %v1722 = vunpack.c.l.b16 %v1626
    %v1723 = vunpack.c.l.b16 %v1627
    %v1724 = vunpack.c.l.b16 %v1628
    %v1725 = vunpack.c.l.b16 %v1629
    %v1726 = vunpack.c.l.b16 %v1630
    %v1727 = vunpack.c.l.b16 %v1631
    %v1728 = vunpack.c.l.b16 %v1632
    %v1729 = vunpack.c.l.b16 %v1633
    %v1730 = vunpack.c.l.b16 %v1634
    %v1731 = vunpack.c.l.b16 %v1635
    %v1732 = vunpack.c.l.b16 %v1636
    %v1733 = vunpack.c.l.b16 %v1637
    %v1734 = vunpack.c.l.b16 %v1638
    %v1735 = vunpack.c.l.b16 %v1639
    %v1736 = vunpack.c.l.b16 %v1640
    %v1737 = vunpack.c.l.b16 %v1641
    %v1738 = vunpack.c.l.b16 %v1642
    %v1739 = vunpack.c.l.b16 %v1643
    %v1740 = vunpack.c.l.b16 %v1644
    %v1741 = vunpack.c.l.b16 %v1645
    %v1742 = vpack.c.b16 %v1695, %v1694
    %v1743 = vpack.c.b16 %v1697, %v1696
    %v1744 = vpack.c.b16 %v1699, %v1698
    %v1745 = vpack.c.b16 %v1701, %v1700
    %v1746 = vpack.c.b16 %v1703, %v1702
    %v1747 = vpack.c.b16 %v1705, %v1704
    %v1748 = vpack.c.b16 %v1707, %v1706
    %v1749 = vpack.c.b16 %v1709, %v1708
    %v1750 = vpack.c.b16 %v1711, %v1710
    %v1751 = vpack.c.b16 %v1713, %v1712
    %v1752 = vpack.c.b16 %v1715, %v1714
    %v1753 = vpack.c.b16 %v1717, %v1716
    %v1754 = vpack.c.b16 %v1719, %v1718
    %v1755 = vpack.c.b16 %v1721, %v1720
    %v1756 = vpack.c.b16 %v1723, %v1722
    %v1757 = vpack.c.b16 %v1725, %v1724
    %v1758 = vpack.c.b16 %v1727, %v1726
    %v1759 = vpack.c.b16 %v1729, %v1728
    %v1760 = vpack.c.b16 %v1731, %v1730
    %v1761 = vpack.c.b16 %v1733, %v1732
    %v1762 = vpack.c.b16 %v1735, %v1734
    %v1763 = vpack.c.b16 %v1737, %v1736
    %v1764 = vpack.c.b16 %v1739, %v1738
    %v1765 = vpack.c.b16 %v1741, %v1740
    %1790 = vmatprep.subr.bf16.mxu0 0
    %1791 = vmatpush1.bf16.msra.mxu0 %v1742
    %1792 = vmatprep.subr.bf16.mxu0 0
    %1793 = vmatpush1.bf16.msra.mxu0 %v1743
    %1794 = vmatprep.subr.bf16.mxu0 0
    %1795 = vmatpush1.bf16.msra.mxu0 %v1744
    %1796 = vmatprep.subr.bf16.mxu0 0
    %1797 = vmatpush1.bf16.msra.mxu0 %v1745
    %1798 = vmatprep.subr.bf16.mxu0 0
    %1799 = vmatpush1.bf16.msra.mxu0 %v1746
    %1800 = vmatprep.subr.bf16.mxu0 0
    %1801 = vmatpush1.bf16.msra.mxu0 %v1747
    %1802 = vmatprep.subr.bf16.mxu0 0
    %1803 = vmatpush1.bf16.msra.mxu0 %v1748
    %1804 = vmatprep.subr.bf16.mxu0 0
    %1805 = vmatpush1.bf16.msra.mxu0 %v1749
    %1806 = vmatprep.subr.bf16.mxu0 0
    %1807 = vmatpush1.bf16.msra.mxu0 %v1750
    %1808 = vmatprep.subr.bf16.mxu0 0
    %1809 = vmatpush1.bf16.msra.mxu0 %v1751
    %1810 = vmatprep.subr.bf16.mxu0 0
    %1811 = vmatpush1.bf16.msra.mxu0 %v1752
    %1812 = vmatprep.subr.bf16.mxu0 0
    %1813 = vmatpush1.bf16.msra.mxu0 %v1753
    %1814 = vmatprep.subr.bf16.mxu0 0
    %1815 = vmatpush1.bf16.msra.mxu0 %v1754
    %1816 = vmatprep.subr.bf16.mxu0 0
    %1817 = vmatpush1.bf16.msra.mxu0 %v1755
    %1818 = vmatprep.subr.bf16.mxu0 0
    %1819 = vmatpush1.bf16.msra.mxu0 %v1756
    %1820 = vmatprep.subr.bf16.mxu0 0
    %1821 = vmatpush1.bf16.msra.mxu0 %v1757
    %1822 = vmatprep.mubr.bf16.mxu0 %v1527
    %1823 = vmatmul.mubr.bf16.gmra.mrb[0].mxu0 %v1526
    %v1824 = vpop.f32.mrb[0].mxu0
    %v1825 = vadd.f32 0.0, %v1824
    %v1826 = vpop.f32.mrb[0].mxu0
    %v1827 = vpop.f32.mrb[0].mxu0
    %v1828 = vadd.f32 0.0, %v1827
    %v1829 = vpop.f32.mrb[0].mxu0
    %1830 = vmatprep.mubr.bf16.mxu0 %v1530
    %1831 = vmatmul.mubr.bf16.gmra.mrb[0].mxu0 %v1529
    %v1832 = vpop.f32.mrb[0].mxu0
    %v1833 = vadd.f32 0.0, %v1832
    %v1834 = vpop.f32.mrb[0].mxu0
    %v1835 = vpop.f32.mrb[0].mxu0
    %v1836 = vadd.f32 0.0, %v1835
    %v1837 = vpop.f32.mrb[0].mxu0
    %1838 = vmatprep.mubr.bf16.mxu0 %v1533
    %1839 = vmatmul.mubr.bf16.gmra.mrb[0].mxu0 %v1532
    %v1840 = vpop.f32.mrb[0].mxu0
    %v1841 = vadd.f32 0.0, %v1840
    %v1842 = vpop.f32.mrb[0].mxu0
    %v1843 = vpop.f32.mrb[0].mxu0
    %v1844 = vadd.f32 0.0, %v1843
    %v1845 = vpop.f32.mrb[0].mxu0
    %1846 = vmatprep.mubr.bf16.mxu0 %v1536
    %1847 = vmatmul.mubr.bf16.gmra.mrb[0].mxu0 %v1535
    %v1848 = vpop.f32.mrb[0].mxu0
    %v1849 = vadd.f32 0.0, %v1848
    %v1850 = vpop.f32.mrb[0].mxu0
    %v1851 = vpop.f32.mrb[0].mxu0
    %v1852 = vadd.f32 0.0, %v1851
    %v1853 = vpop.f32.mrb[0].mxu0
    %1854 = vmatprep.mubr.bf16.mxu0 %v1539
    %1855 = vmatmul.mubr.bf16.gmra.mrb[0].mxu0 %v1538
    %v1856 = vpop.f32.mrb[0].mxu0
    %v1857 = vadd.f32 0.0, %v1856
    %v1858 = vpop.f32.mrb[0].mxu0
    %v1859 = vpop.f32.mrb[0].mxu0
    %v1860 = vadd.f32 0.0, %v1859
    %v1861 = vpop.f32.mrb[0].mxu0
    %1862 = vmatprep.mubr.bf16.mxu0 %v1542
    %1863 = vmatmul.mubr.bf16.gmra.mrb[0].mxu0 %v1541
    %v1864 = vpop.f32.mrb[0].mxu0
    %v1865 = vadd.f32 0.0, %v1864
    %v1866 = vpop.f32.mrb[0].mxu0
    %v1867 = vpop.f32.mrb[0].mxu0
    %v1868 = vadd.f32 0.0, %v1867
    %v1869 = vpop.f32.mrb[0].mxu0
    %1870 = vmatprep.mubr.bf16.mxu0 %v1545
    %1871 = vmatmul.mubr.bf16.gmra.mrb[0].mxu0 %v1544
    %v1872 = vpop.f32.mrb[0].mxu0
    %v1873 = vadd.f32 0.0, %v1872
    %v1874 = vpop.f32.mrb[0].mxu0
    %v1875 = vpop.f32.mrb[0].mxu0
    %v1876 = vadd.f32 0.0, %v1875
    %v1877 = vpop.f32.mrb[0].mxu0
    %1878 = vmatprep.mubr.bf16.mxu0 %v1548
    %1879 = vmatmul.mubr.bf16.gmra.mrb[0].mxu0 %v1547
    %v1880 = vpop.f32.mrb[0].mxu0
    %v1881 = vadd.f32 0.0, %v1880
    %v1882 = vpop.f32.mrb[0].mxu0
    %v1883 = vpop.f32.mrb[0].mxu0
    %v1884 = vadd.f32 0.0, %v1883
    %v1885 = vpop.f32.mrb[0].mxu0
    %1886 = vmatprep.mubr.bf16.mxu0 %v1551
    %1887 = vmatmul.mubr.bf16.gmra.mrb[0].mxu0 %v1550
    %v1888 = vpop.f32.mrb[0].mxu0
    %v1889 = vadd.f32 0.0, %v1888
    %v1890 = vpop.f32.mrb[0].mxu0
    %v1891 = vpop.f32.mrb[0].mxu0
    %v1892 = vadd.f32 0.0, %v1891
    %v1893 = vpop.f32.mrb[0].mxu0
    %1894 = vmatprep.mubr.bf16.mxu0 %v1554
    %1895 = vmatmul.mubr.bf16.gmra.mrb[0].mxu0 %v1553
    %v1896 = vpop.f32.mrb[0].mxu0
    %v1897 = vadd.f32 0.0, %v1896
    %v1898 = vpop.f32.mrb[0].mxu0
    %v1899 = vpop.f32.mrb[0].mxu0
    %v1900 = vadd.f32 0.0, %v1899
    %v1901 = vpop.f32.mrb[0].mxu0
    %1902 = vmatprep.mubr.bf16.mxu0 %v1557
    %1903 = vmatmul.mubr.bf16.gmra.mrb[0].mxu0 %v1556
    %v1904 = vpop.f32.mrb[0].mxu0
    %v1905 = vadd.f32 0.0, %v1904
    %v1906 = vpop.f32.mrb[0].mxu0
    %v1907 = vpop.f32.mrb[0].mxu0
    %v1908 = vadd.f32 0.0, %v1907
    %v1909 = vpop.f32.mrb[0].mxu0
    %1910 = vmatprep.mubr.bf16.mxu0 %v1560
    %1911 = vmatmul.mubr.bf16.gmra.mrb[0].mxu0 %v1559
    %v1912 = vpop.f32.mrb[0].mxu0
    %v1913 = vadd.f32 0.0, %v1912
    %v1914 = vpop.f32.mrb[0].mxu0
    %v1915 = vpop.f32.mrb[0].mxu0
    %v1916 = vadd.f32 0.0, %v1915
    %v1917 = vpop.f32.mrb[0].mxu0
    %1918 = vmatprep.mubr.bf16.mxu0 %v1563
    %1919 = vmatmul.mubr.bf16.gmra.mrb[0].mxu0 %v1562
    %v1920 = vpop.f32.mrb[0].mxu0
    %v1921 = vadd.f32 0.0, %v1920
    %v1922 = vpop.f32.mrb[0].mxu0
    %v1923 = vpop.f32.mrb[0].mxu0
    %v1924 = vadd.f32 0.0, %v1923
    %v1925 = vpop.f32.mrb[0].mxu0
    %1926 = vmatprep.mubr.bf16.mxu0 %v1566
    %1927 = vmatmul.mubr.bf16.gmra.mrb[0].mxu0 %v1565
    %v1928 = vpop.f32.mrb[0].mxu0
    %v1929 = vadd.f32 0.0, %v1928
    %v1930 = vpop.f32.mrb[0].mxu0
    %v1931 = vpop.f32.mrb[0].mxu0
    %v1932 = vadd.f32 0.0, %v1931
    %v1933 = vpop.f32.mrb[0].mxu0
    %1934 = vmatprep.mubr.bf16.mxu0 %v1569
    %1935 = vmatmul.mubr.bf16.gmra.mrb[0].mxu0 %v1568
    %v1936 = vpop.f32.mrb[0].mxu0
    %v1937 = vadd.f32 0.0, %v1936
    %v1938 = vpop.f32.mrb[0].mxu0
    %v1939 = vpop.f32.mrb[0].mxu0
    %v1940 = vadd.f32 0.0, %v1939
    %v1941 = vpop.f32.mrb[0].mxu0
    %1942 = vmatprep.mubr.bf16.mxu0 %v1572
    %1943 = vmatmul.mubr.bf16.gmra.mrb[0].mxu0 %v1571
    %v1944 = vpop.f32.mrb[0].mxu0
    %v1945 = vadd.f32 0.0, %v1944
    %v1946 = vpop.f32.mrb[0].mxu0
    %v1947 = vpop.f32.mrb[0].mxu0
    %v1948 = vadd.f32 0.0, %v1947
    %v1949 = vpop.f32.mrb[0].mxu0
    %1950 = vmatprep.mubr.bf16.mxu0 %v1575
    %1951 = vmatmul.mubr.bf16.gmra.mrb[0].mxu0 %v1574
    %v1952 = vpop.f32.mrb[0].mxu0
    %v1953 = vadd.f32 0.0, %v1952
    %v1954 = vpop.f32.mrb[0].mxu0
    %v1955 = vpop.f32.mrb[0].mxu0
    %v1956 = vadd.f32 0.0, %v1955
    %v1957 = vpop.f32.mrb[0].mxu0
    %1958 = vmatprep.mubr.bf16.mxu0 %v1578
    %1959 = vmatmul.mubr.bf16.gmra.mrb[0].mxu0 %v1577
    %v1960 = vpop.f32.mrb[0].mxu0
    %v1961 = vadd.f32 0.0, %v1960
    %v1962 = vpop.f32.mrb[0].mxu0
    %v1963 = vpop.f32.mrb[0].mxu0
    %v1964 = vadd.f32 0.0, %v1963
    %v1965 = vpop.f32.mrb[0].mxu0
    %1966 = vmatprep.mubr.bf16.mxu0 %v1581
    %1967 = vmatmul.mubr.bf16.gmra.mrb[0].mxu0 %v1580
    %v1968 = vpop.f32.mrb[0].mxu0
    %v1969 = vadd.f32 0.0, %v1968
    %v1970 = vpop.f32.mrb[0].mxu0
    %v1971 = vpop.f32.mrb[0].mxu0
    %v1972 = vadd.f32 0.0, %v1971
    %v1973 = vpop.f32.mrb[0].mxu0
    %1974 = vmatprep.mubr.bf16.mxu0 %v1584
    %1975 = vmatmul.mubr.bf16.gmra.mrb[0].mxu0 %v1583
    %v1976 = vpop.f32.mrb[0].mxu0
    %v1977 = vadd.f32 0.0, %v1976
    %v1978 = vpop.f32.mrb[0].mxu0
    %v1979 = vpop.f32.mrb[0].mxu0
    %v1980 = vadd.f32 0.0, %v1979
    %v1981 = vpop.f32.mrb[0].mxu0
    %1982 = vmatprep.mubr.bf16.mxu0 %v1587
    %1983 = vmatmul.mubr.bf16.gmra.mrb[0].mxu0 %v1586
    %v1984 = vpop.f32.mrb[0].mxu0
    %v1985 = vadd.f32 0.0, %v1984
    %v1986 = vpop.f32.mrb[0].mxu0
    %v1987 = vpop.f32.mrb[0].mxu0
    %v1988 = vadd.f32 0.0, %v1987
    %v1989 = vpop.f32.mrb[0].mxu0
    %1990 = vmatprep.mubr.bf16.mxu0 %v1590
    %1991 = vmatmul.mubr.bf16.gmra.mrb[0].mxu0 %v1589
    %v1992 = vpop.f32.mrb[0].mxu0
    %v1993 = vadd.f32 0.0, %v1992
    %v1994 = vpop.f32.mrb[0].mxu0
    %v1995 = vpop.f32.mrb[0].mxu0
    %v1996 = vadd.f32 0.0, %v1995
    %v1997 = vpop.f32.mrb[0].mxu0
    %1998 = vmatprep.mubr.bf16.mxu0 %v1593
    %1999 = vmatmul.mubr.bf16.gmra.mrb[0].mxu0 %v1592
    %v2000 = vpop.f32.mrb[0].mxu0
    %v2001 = vadd.f32 0.0, %v2000
    %v2002 = vpop.f32.mrb[0].mxu0
    %v2003 = vpop.f32.mrb[0].mxu0
    %v2004 = vadd.f32 0.0, %v2003
    %v2005 = vpop.f32.mrb[0].mxu0
    %2006 = vmatprep.mubr.bf16.mxu0 %v1596
    %2007 = vmatmul.mubr.bf16.gmra.mrb[0].mxu0 %v1595
    %v2008 = vpop.f32.mrb[0].mxu0
    %v2009 = vadd.f32 0.0, %v2008
    %v2010 = vpop.f32.mrb[0].mxu0
    %v2011 = vpop.f32.mrb[0].mxu0
    %v2012 = vadd.f32 0.0, %v2011
    %v2013 = vpop.f32.mrb[0].mxu0
    %2014 = vdwg.mxu0
    %2015 = vmatprep.subr.bf16.mxu0 0
    %2016 = vmatpush1.bf16.msra.mxu0 %v1758
    %2017 = vmatprep.subr.bf16.mxu0 0
    %2018 = vmatpush1.bf16.msra.mxu0 %v1759
    %2019 = vmatprep.subr.bf16.mxu0 0
    %2020 = vmatpush1.bf16.msra.mxu0 %v1760
    %2021 = vmatprep.subr.bf16.mxu0 0
    %2022 = vmatpush1.bf16.msra.mxu0 %v1761
    %2023 = vmatprep.subr.bf16.mxu0 0
    %2024 = vmatpush1.bf16.msra.mxu0 %v1762
    %2025 = vmatprep.subr.bf16.mxu0 0
    %2026 = vmatpush1.bf16.msra.mxu0 %v1763
    %2027 = vmatprep.subr.bf16.mxu0 0
    %2028 = vmatpush1.bf16.msra.mxu0 %v1764
    %2029 = vmatprep.subr.bf16.mxu0 0
    %2030 = vmatpush1.bf16.msra.mxu0 %v1765
    %2031 = vmatprep.subr.bf16.mxu0 0
    %2032 = vmatpush1.bf16.msra.mxu0 0
    %2033 = vmatprep.subr.bf16.mxu0 0
    %2034 = vmatpush1.bf16.msra.mxu0 0
    %2035 = vmatprep.subr.bf16.mxu0 0
    %2036 = vmatpush1.bf16.msra.mxu0 0
    %2037 = vmatprep.subr.bf16.mxu0 0
    %2038 = vmatpush1.bf16.msra.mxu0 0
    %2039 = vmatprep.subr.bf16.mxu0 0
    %2040 = vmatpush1.bf16.msra.mxu0 0
    %2041 = vmatprep.subr.bf16.mxu0 0
    %2042 = vmatpush1.bf16.msra.mxu0 0
    %2043 = vmatprep.subr.bf16.mxu0 0
    %2044 = vmatpush1.bf16.msra.mxu0 0
    %2045 = vmatprep.subr.bf16.mxu0 0
    %2046 = vmatpush1.bf16.msra.mxu0 0
    %2047 = vmatprep.mubr.bf16.mxu0 0
    %2048 = vmatmul.mubr.bf16.gmra.mrb[0].mxu0 %v1528
    %v2049 = vpop.f32.mrb[0].mxu0
    %v2050 = vadd.f32 %v1825, %v2049
    %v2051 = vpop.f32.mrb[0].mxu0
    %v2052 = vpop.f32.mrb[0].mxu0
    %v2053 = vadd.f32 %v1828, %v2052
    %v2054 = vpop.f32.mrb[0].mxu0
    %2055 = vmatprep.mubr.bf16.mxu0 0
    %2056 = vmatmul.mubr.bf16.gmra.mrb[0].mxu0 %v1531
    %v2057 = vpop.f32.mrb[0].mxu0
    %v2058 = vadd.f32 %v1833, %v2057
    %v2059 = vpop.f32.mrb[0].mxu0
    %v2060 = vpop.f32.mrb[0].mxu0
    %v2061 = vadd.f32 %v1836, %v2060
    %v2062 = vpop.f32.mrb[0].mxu0
    %2063 = vmatprep.mubr.bf16.mxu0 0
    %2064 = vmatmul.mubr.bf16.gmra.mrb[0].mxu0 %v1534
    %v2065 = vpop.f32.mrb[0].mxu0
    %v2066 = vadd.f32 %v1841, %v2065
    %v2067 = vpop.f32.mrb[0].mxu0
    %v2068 = vpop.f32.mrb[0].mxu0
    %v2069 = vadd.f32 %v1844, %v2068
    %v2070 = vpop.f32.mrb[0].mxu0
    %2071 = vmatprep.mubr.bf16.mxu0 0
    %2072 = vmatmul.mubr.bf16.gmra.mrb[0].mxu0 %v1537
    %v2073 = vpop.f32.mrb[0].mxu0
    %v2074 = vadd.f32 %v1849, %v2073
    %v2075 = vpop.f32.mrb[0].mxu0
    %v2076 = vpop.f32.mrb[0].mxu0
    %v2077 = vadd.f32 %v1852, %v2076
    %v2078 = vpop.f32.mrb[0].mxu0
    %2079 = vmatprep.mubr.bf16.mxu0 0
    %2080 = vmatmul.mubr.bf16.gmra.mrb[0].mxu0 %v1540
    %v2081 = vpop.f32.mrb[0].mxu0
    %v2082 = vadd.f32 %v1857, %v2081
    %v2083 = vpop.f32.mrb[0].mxu0
    %v2084 = vpop.f32.mrb[0].mxu0
    %v2085 = vadd.f32 %v1860, %v2084
    %v2086 = vpop.f32.mrb[0].mxu0
    %2087 = vmatprep.mubr.bf16.mxu0 0
    %2088 = vmatmul.mubr.bf16.gmra.mrb[0].mxu0 %v1543
    %v2089 = vpop.f32.mrb[0].mxu0
    %v2090 = vadd.f32 %v1865, %v2089
    %v2091 = vpop.f32.mrb[0].mxu0
    %v2092 = vpop.f32.mrb[0].mxu0
    %v2093 = vadd.f32 %v1868, %v2092
    %v2094 = vpop.f32.mrb[0].mxu0
    %2095 = vmatprep.mubr.bf16.mxu0 0
    %2096 = vmatmul.mubr.bf16.gmra.mrb[0].mxu0 %v1546
    %v2097 = vpop.f32.mrb[0].mxu0
    %v2098 = vadd.f32 %v1873, %v2097
    %v2099 = vpop.f32.mrb[0].mxu0
    %v2100 = vpop.f32.mrb[0].mxu0
    %v2101 = vadd.f32 %v1876, %v2100
    %v2102 = vpop.f32.mrb[0].mxu0
    %2103 = vmatprep.mubr.bf16.mxu0 0
    %2104 = vmatmul.mubr.bf16.gmra.mrb[0].mxu0 %v1549
    %v2105 = vpop.f32.mrb[0].mxu0
    %v2106 = vadd.f32 %v1881, %v2105
    %v2107 = vpop.f32.mrb[0].mxu0
    %v2108 = vpop.f32.mrb[0].mxu0
    %v2109 = vadd.f32 %v1884, %v2108
    %v2110 = vpop.f32.mrb[0].mxu0
    %2111 = vmatprep.mubr.bf16.mxu0 0
    %2112 = vmatmul.mubr.bf16.gmra.mrb[0].mxu0 %v1552
    %v2113 = vpop.f32.mrb[0].mxu0
    %v2114 = vadd.f32 %v1889, %v2113
    %v2115 = vpop.f32.mrb[0].mxu0
    %v2116 = vpop.f32.mrb[0].mxu0
    %v2117 = vadd.f32 %v1892, %v2116
    %v2118 = vpop.f32.mrb[0].mxu0
    %2119 = vmatprep.mubr.bf16.mxu0 0
    %2120 = vmatmul.mubr.bf16.gmra.mrb[0].mxu0 %v1555
    %v2121 = vpop.f32.mrb[0].mxu0
    %v2122 = vadd.f32 %v1897, %v2121
    %v2123 = vpop.f32.mrb[0].mxu0
    %v2124 = vpop.f32.mrb[0].mxu0
    %v2125 = vadd.f32 %v1900, %v2124
    %v2126 = vpop.f32.mrb[0].mxu0
    %2127 = vmatprep.mubr.bf16.mxu0 0
    %2128 = vmatmul.mubr.bf16.gmra.mrb[0].mxu0 %v1558
    %v2129 = vpop.f32.mrb[0].mxu0
    %v2130 = vadd.f32 %v1905, %v2129
    %v2131 = vpop.f32.mrb[0].mxu0
    %v2132 = vpop.f32.mrb[0].mxu0
    %v2133 = vadd.f32 %v1908, %v2132
    %v2134 = vpop.f32.mrb[0].mxu0
    %2135 = vmatprep.mubr.bf16.mxu0 0
    %2136 = vmatmul.mubr.bf16.gmra.mrb[0].mxu0 %v1561
    %v2137 = vpop.f32.mrb[0].mxu0
    %v2138 = vadd.f32 %v1913, %v2137
    %v2139 = vpop.f32.mrb[0].mxu0
    %v2140 = vpop.f32.mrb[0].mxu0
    %v2141 = vadd.f32 %v1916, %v2140
    %v2142 = vpop.f32.mrb[0].mxu0
    %2143 = vmatprep.mubr.bf16.mxu0 0
    %2144 = vmatmul.mubr.bf16.gmra.mrb[0].mxu0 %v1564
    %v2145 = vpop.f32.mrb[0].mxu0
    %v2146 = vadd.f32 %v1921, %v2145
    %v2147 = vpop.f32.mrb[0].mxu0
    %v2148 = vpop.f32.mrb[0].mxu0
    %v2149 = vadd.f32 %v1924, %v2148
    %v2150 = vpop.f32.mrb[0].mxu0
    %2151 = vmatprep.mubr.bf16.mxu0 0
    %2152 = vmatmul.mubr.bf16.gmra.mrb[0].mxu0 %v1567
    %v2153 = vpop.f32.mrb[0].mxu0
    %v2154 = vadd.f32 %v1929, %v2153
    %v2155 = vpop.f32.mrb[0].mxu0
    %v2156 = vpop.f32.mrb[0].mxu0
    %v2157 = vadd.f32 %v1932, %v2156
    %v2158 = vpop.f32.mrb[0].mxu0
    %2159 = vmatprep.mubr.bf16.mxu0 0
    %2160 = vmatmul.mubr.bf16.gmra.mrb[0].mxu0 %v1570
    %v2161 = vpop.f32.mrb[0].mxu0
    %v2162 = vadd.f32 %v1937, %v2161
    %v2163 = vpop.f32.mrb[0].mxu0
    %v2164 = vpop.f32.mrb[0].mxu0
    %v2165 = vadd.f32 %v1940, %v2164
    %v2166 = vpop.f32.mrb[0].mxu0
    %2167 = vmatprep.mubr.bf16.mxu0 0
    %2168 = vmatmul.mubr.bf16.gmra.mrb[0].mxu0 %v1573
    %v2169 = vpop.f32.mrb[0].mxu0
    %v2170 = vadd.f32 %v1945, %v2169
    %v2171 = vpop.f32.mrb[0].mxu0
    %v2172 = vpop.f32.mrb[0].mxu0
    %v2173 = vadd.f32 %v1948, %v2172
    %v2174 = vpop.f32.mrb[0].mxu0
    %2175 = vmatprep.mubr.bf16.mxu0 0
    %2176 = vmatmul.mubr.bf16.gmra.mrb[0].mxu0 %v1576
    %v2177 = vpop.f32.mrb[0].mxu0
    %v2178 = vadd.f32 %v1953, %v2177
    %v2179 = vpop.f32.mrb[0].mxu0
    %v2180 = vpop.f32.mrb[0].mxu0
    %v2181 = vadd.f32 %v1956, %v2180
    %v2182 = vpop.f32.mrb[0].mxu0
    %2183 = vmatprep.mubr.bf16.mxu0 0
    %2184 = vmatmul.mubr.bf16.gmra.mrb[0].mxu0 %v1579
    %v2185 = vpop.f32.mrb[0].mxu0
    %v2186 = vadd.f32 %v1961, %v2185
    %v2187 = vpop.f32.mrb[0].mxu0
    %v2188 = vpop.f32.mrb[0].mxu0
    %v2189 = vadd.f32 %v1964, %v2188
    %v2190 = vpop.f32.mrb[0].mxu0
    %2191 = vmatprep.mubr.bf16.mxu0 0
    %2192 = vmatmul.mubr.bf16.gmra.mrb[0].mxu0 %v1582
    %v2193 = vpop.f32.mrb[0].mxu0
    %v2194 = vadd.f32 %v1969, %v2193
    %v2195 = vpop.f32.mrb[0].mxu0
    %v2196 = vpop.f32.mrb[0].mxu0
    %v2197 = vadd.f32 %v1972, %v2196
    %v2198 = vpop.f32.mrb[0].mxu0
    %2199 = vmatprep.mubr.bf16.mxu0 0
    %2200 = vmatmul.mubr.bf16.gmra.mrb[0].mxu0 %v1585
    %v2201 = vpop.f32.mrb[0].mxu0
    %v2202 = vadd.f32 %v1977, %v2201
    %v2203 = vpop.f32.mrb[0].mxu0
    %v2204 = vpop.f32.mrb[0].mxu0
    %v2205 = vadd.f32 %v1980, %v2204
    %v2206 = vpop.f32.mrb[0].mxu0
    %2207 = vmatprep.mubr.bf16.mxu0 0
    %2208 = vmatmul.mubr.bf16.gmra.mrb[0].mxu0 %v1588
    %v2209 = vpop.f32.mrb[0].mxu0
    %v2210 = vadd.f32 %v1985, %v2209
    %v2211 = vpop.f32.mrb[0].mxu0
    %v2212 = vpop.f32.mrb[0].mxu0
    %v2213 = vadd.f32 %v1988, %v2212
    %v2214 = vpop.f32.mrb[0].mxu0
    %2215 = vmatprep.mubr.bf16.mxu0 0
    %2216 = vmatmul.mubr.bf16.gmra.mrb[0].mxu0 %v1591
    %v2217 = vpop.f32.mrb[0].mxu0
    %v2218 = vadd.f32 %v1993, %v2217
    %v2219 = vpop.f32.mrb[0].mxu0
    %v2220 = vpop.f32.mrb[0].mxu0
    %v2221 = vadd.f32 %v1996, %v2220
    %v2222 = vpop.f32.mrb[0].mxu0
    %2223 = vmatprep.mubr.bf16.mxu0 0
    %2224 = vmatmul.mubr.bf16.gmra.mrb[0].mxu0 %v1594
    %v2225 = vpop.f32.mrb[0].mxu0
    %v2226 = vadd.f32 %v2001, %v2225
    %v2227 = vpop.f32.mrb[0].mxu0
    %v2228 = vpop.f32.mrb[0].mxu0
    %v2229 = vadd.f32 %v2004, %v2228
    %v2230 = vpop.f32.mrb[0].mxu0
    %2231 = vmatprep.mubr.bf16.mxu0 0
    %2232 = vmatmul.mubr.bf16.gmra.mrb[0].mxu0 %v1597
    %v2233 = vpop.f32.mrb[0].mxu0
    %v2234 = vadd.f32 %v2009, %v2233
    %v2235 = vpop.f32.mrb[0].mxu0
    %v2236 = vpop.f32.mrb[0].mxu0
    %v2237 = vadd.f32 %v2012, %v2236
    %v2238 = vpop.f32.mrb[0].mxu0
    %2239 = vdwg.mxu0
    %p2240 = scmp.eq.s32.totalorder 0, 0
    // Predicated region
    $region22: #{tpu_custom_call.1} parent=1 // pred_check
      %p2241 = pneg %p2240
    $region23: #{tpu_custom_call.1} parent=1 // pred_check_branch
      %2243 = sbr.rel (%p2241) target = $region25
    $region24: #{tpu_custom_call.1} parent=1 // pred_region
      %2244 = vst [vmem:[#allocation5] sm:$0xff] %v2050
      %2245 = vst [vmem:[#allocation5 + $0x8] sm:$0xff] %v2053
      %2246 = vst [vmem:[#allocation5 + $0x10] sm:$0xff] %v2058
      %2247 = vst [vmem:[#allocation5 + $0x18] sm:$0xff] %v2061
      %2248 = vst [vmem:[#allocation5 + $0x20] sm:$0xff] %v2066
      %2249 = vst [vmem:[#allocation5 + $0x28] sm:$0xff] %v2069
      %2250 = vst [vmem:[#allocation5 + $0x30] sm:$0xff] %v2074
      %2251 = vst [vmem:[#allocation5 + $0x38] sm:$0xff] %v2077
      %2252 = vst [vmem:[#allocation5 + $0x40] sm:$0xff] %v2082
      %2253 = vst [vmem:[#allocation5 + $0x48] sm:$0xff] %v2085
      %2254 = vst [vmem:[#allocation5 + $0x50] sm:$0xff] %v2090
      %2255 = vst [vmem:[#allocation5 + $0x58] sm:$0xff] %v2093
      %2256 = vst [vmem:[#allocation5 + $0x60] sm:$0xff] %v2098
      %2257 = vst [vmem:[#allocation5 + $0x68] sm:$0xff] %v2101
      %2258 = vst [vmem:[#allocation5 + $0x70] sm:$0xff] %v2106
      %2259 = vst [vmem:[#allocation5 + $0x78] sm:$0xff] %v2109
      %2260 = vst [vmem:[#allocation5 + $0x80] sm:$0xff] %v2114
      %2261 = vst [vmem:[#allocation5 + $0x88] sm:$0xff] %v2117
      %2262 = vst [vmem:[#allocation5 + $0x90] sm:$0xff] %v2122
      %2263 = vst [vmem:[#allocation5 + $0x98] sm:$0xff] %v2125
      %2264 = vst [vmem:[#allocation5 + $0xa0] sm:$0xff] %v2130
      %2265 = vst [vmem:[#allocation5 + $0xa8] sm:$0xff] %v2133
      %2266 = vst [vmem:[#allocation5 + $0xb0] sm:$0xff] %v2138
      %2267 = vst [vmem:[#allocation5 + $0xb8] sm:$0xff] %v2141
      %2268 = vst [vmem:[#allocation5 + $0xc0] sm:$0xff] %v2146
      %2269 = vst [vmem:[#allocation5 + $0xc8] sm:$0xff] %v2149
      %2270 = vst [vmem:[#allocation5 + $0xd0] sm:$0xff] %v2154
      %2271 = vst [vmem:[#allocation5 + $0xd8] sm:$0xff] %v2157
      %2272 = vst [vmem:[#allocation5 + $0xe0] sm:$0xff] %v2162
      %2273 = vst [vmem:[#allocation5 + $0xe8] sm:$0xff] %v2165
      %2274 = vst [vmem:[#allocation5 + $0xf0] sm:$0xff] %v2170
      %2275 = vst [vmem:[#allocation5 + $0xf8] sm:$0xff] %v2173
      %2276 = vst [vmem:[#allocation5 + $0x100] sm:$0xff] %v2178
      %2277 = vst [vmem:[#allocation5 + $0x108] sm:$0xff] %v2181
      %2278 = vst [vmem:[#allocation5 + $0x110] sm:$0xff] %v2186
      %2279 = vst [vmem:[#allocation5 + $0x118] sm:$0xff] %v2189
      %2280 = vst [vmem:[#allocation5 + $0x120] sm:$0xff] %v2194
      %2281 = vst [vmem:[#allocation5 + $0x128] sm:$0xff] %v2197
      %2282 = vst [vmem:[#allocation5 + $0x130] sm:$0xff] %v2202
      %2283 = vst [vmem:[#allocation5 + $0x138] sm:$0xff] %v2205
      %2284 = vst [vmem:[#allocation5 + $0x140] sm:$0xff] %v2210
      %2285 = vst [vmem:[#allocation5 + $0x148] sm:$0xff] %v2213
      %2286 = vst [vmem:[#allocation5 + $0x150] sm:$0xff] %v2218
      %2287 = vst [vmem:[#allocation5 + $0x158] sm:$0xff] %v2221
      %2288 = vst [vmem:[#allocation5 + $0x160] sm:$0xff] %v2226
      %2289 = vst [vmem:[#allocation5 + $0x168] sm:$0xff] %v2229
      %2290 = vst [vmem:[#allocation5 + $0x170] sm:$0xff] %v2234
      %2291 = vst [vmem:[#allocation5 + $0x178] sm:$0xff] %v2237
    $region25: #{tpu_custom_call.1} parent=1 // pred_fallthru
      _
    %p2292 = scmp.gt.s32.totalorder 0, 0
    // Predicated region
    $region26: #{tpu_custom_call.1} parent=1 // pred_check
      %p2293 = pneg %p2292
    $region27: #{tpu_custom_call.1} parent=1 // pred_check_branch
      %2295 = sbr.rel (%p2293) target = $region29
    $region28: #{tpu_custom_call.1} parent=1 // pred_region
      %v2296 = vld [vmem:[#allocation5] sm:$0xff]
      %v2297 = vld [vmem:[#allocation5 + $0x8] sm:$0xff]
      %v2298 = vld [vmem:[#allocation5 + $0x10] sm:$0xff]
      %v2299 = vld [vmem:[#allocation5 + $0x18] sm:$0xff]
      %v2300 = vld [vmem:[#allocation5 + $0x20] sm:$0xff]
      %v2301 = vld [vmem:[#allocation5 + $0x28] sm:$0xff]
      %v2302 = vld [vmem:[#allocation5 + $0x30] sm:$0xff]
      %v2303 = vld [vmem:[#allocation5 + $0x38] sm:$0xff]
      %v2304 = vld [vmem:[#allocation5 + $0x40] sm:$0xff]
      %v2305 = vld [vmem:[#allocation5 + $0x48] sm:$0xff]
      %v2306 = vld [vmem:[#allocation5 + $0x50] sm:$0xff]
      %v2307 = vld [vmem:[#allocation5 + $0x58] sm:$0xff]
      %v2308 = vld [vmem:[#allocation5 + $0x60] sm:$0xff]
      %v2309 = vld [vmem:[#allocation5 + $0x68] sm:$0xff]
      %v2310 = vld [vmem:[#allocation5 + $0x70] sm:$0xff]
      %v2311 = vld [vmem:[#allocation5 + $0x78] sm:$0xff]
      %v2312 = vld [vmem:[#allocation5 + $0x80] sm:$0xff]
      %v2313 = vld [vmem:[#allocation5 + $0x88] sm:$0xff]
      %v2314 = vld [vmem:[#allocation5 + $0x90] sm:$0xff]
      %v2315 = vld [vmem:[#allocation5 + $0x98] sm:$0xff]
      %v2316 = vld [vmem:[#allocation5 + $0xa0] sm:$0xff]
      %v2317 = vld [vmem:[#allocation5 + $0xa8] sm:$0xff]
      %v2318 = vld [vmem:[#allocation5 + $0xb0] sm:$0xff]
      %v2319 = vld [vmem:[#allocation5 + $0xb8] sm:$0xff]
      %v2320 = vld [vmem:[#allocation5 + $0xc0] sm:$0xff]
      %v2321 = vld [vmem:[#allocation5 + $0xc8] sm:$0xff]
      %v2322 = vld [vmem:[#allocation5 + $0xd0] sm:$0xff]
      %v2323 = vld [vmem:[#allocation5 + $0xd8] sm:$0xff]
      %v2324 = vld [vmem:[#allocation5 + $0xe0] sm:$0xff]
      %v2325 = vld [vmem:[#allocation5 + $0xe8] sm:$0xff]
      %v2326 = vld [vmem:[#allocation5 + $0xf0] sm:$0xff]
      %v2327 = vld [vmem:[#allocation5 + $0xf8] sm:$0xff]
      %v2328 = vld [vmem:[#allocation5 + $0x100] sm:$0xff]
      %v2329 = vld [vmem:[#allocation5 + $0x108] sm:$0xff]
      %v2330 = vld [vmem:[#allocation5 + $0x110] sm:$0xff]
      %v2331 = vld [vmem:[#allocation5 + $0x118] sm:$0xff]
      %v2332 = vld [vmem:[#allocation5 + $0x120] sm:$0xff]
      %v2333 = vld [vmem:[#allocation5 + $0x128] sm:$0xff]
      %v2334 = vld [vmem:[#allocation5 + $0x130] sm:$0xff]
      %v2335 = vld [vmem:[#allocation5 + $0x138] sm:$0xff]
      %v2336 = vld [vmem:[#allocation5 + $0x140] sm:$0xff]
      %v2337 = vld [vmem:[#allocation5 + $0x148] sm:$0xff]
      %v2338 = vld [vmem:[#allocation5 + $0x150] sm:$0xff]
      %v2339 = vld [vmem:[#allocation5 + $0x158] sm:$0xff]
      %v2340 = vld [vmem:[#allocation5 + $0x160] sm:$0xff]
      %v2341 = vld [vmem:[#allocation5 + $0x168] sm:$0xff]
      %v2342 = vld [vmem:[#allocation5 + $0x170] sm:$0xff]
      %v2343 = vld [vmem:[#allocation5 + $0x178] sm:$0xff]
      %v2344 = vadd.f32 %v2296, %v2050
      %v2345 = vadd.f32 %v2297, %v2053
      %v2346 = vadd.f32 %v2298, %v2058
      %v2347 = vadd.f32 %v2299, %v2061
      %v2348 = vadd.f32 %v2300, %v2066
      %v2349 = vadd.f32 %v2301, %v2069
      %v2350 = vadd.f32 %v2302, %v2074
      %v2351 = vadd.f32 %v2303, %v2077
      %v2352 = vadd.f32 %v2304, %v2082
      %v2353 = vadd.f32 %v2305, %v2085
      %v2354 = vadd.f32 %v2306, %v2090
      %v2355 = vadd.f32 %v2307, %v2093
      %v2356 = vadd.f32 %v2308, %v2098
      %v2357 = vadd.f32 %v2309, %v2101
      %v2358 = vadd.f32 %v2310, %v2106
      %v2359 = vadd.f32 %v2311, %v2109
      %v2360 = vadd.f32 %v2312, %v2114
      %v2361 = vadd.f32 %v2313, %v2117
      %v2362 = vadd.f32 %v2314, %v2122
      %v2363 = vadd.f32 %v2315, %v2125
      %v2364 = vadd.f32 %v2316, %v2130
      %v2365 = vadd.f32 %v2317, %v2133
      %v2366 = vadd.f32 %v2318, %v2138
      %v2367 = vadd.f32 %v2319, %v2141
      %v2368 = vadd.f32 %v2320, %v2146
      %v2369 = vadd.f32 %v2321, %v2149
      %v2370 = vadd.f32 %v2322, %v2154
      %v2371 = vadd.f32 %v2323, %v2157
      %v2372 = vadd.f32 %v2324, %v2162
      %v2373 = vadd.f32 %v2325, %v2165
      %v2374 = vadd.f32 %v2326, %v2170
      %v2375 = vadd.f32 %v2327, %v2173
      %v2376 = vadd.f32 %v2328, %v2178
      %v2377 = vadd.f32 %v2329, %v2181
      %v2378 = vadd.f32 %v2330, %v2186
      %v2379 = vadd.f32 %v2331, %v2189
      %v2380 = vadd.f32 %v2332, %v2194
      %v2381 = vadd.f32 %v2333, %v2197
      %v2382 = vadd.f32 %v2334, %v2202
      %v2383 = vadd.f32 %v2335, %v2205
      %v2384 = vadd.f32 %v2336, %v2210
      %v2385 = vadd.f32 %v2337, %v2213
      %v2386 = vadd.f32 %v2338, %v2218
      %v2387 = vadd.f32 %v2339, %v2221
      %v2388 = vadd.f32 %v2340, %v2226
      %v2389 = vadd.f32 %v2341, %v2229
      %v2390 = vadd.f32 %v2342, %v2234
      %v2391 = vadd.f32 %v2343, %v2237
      %2392 = vst [vmem:[#allocation5] sm:$0xff] %v2344
      %2393 = vst [vmem:[#allocation5 + $0x8] sm:$0xff] %v2345
      %2394 = vst [vmem:[#allocation5 + $0x10] sm:$0xff] %v2346
      %2395 = vst [vmem:[#allocation5 + $0x18] sm:$0xff] %v2347
      %2396 = vst [vmem:[#allocation5 + $0x20] sm:$0xff] %v2348
      %2397 = vst [vmem:[#allocation5 + $0x28] sm:$0xff] %v2349
      %2398 = vst [vmem:[#allocation5 + $0x30] sm:$0xff] %v2350
      %2399 = vst [vmem:[#allocation5 + $0x38] sm:$0xff] %v2351
      %2400 = vst [vmem:[#allocation5 + $0x40] sm:$0xff] %v2352
      %2401 = vst [vmem:[#allocation5 + $0x48] sm:$0xff] %v2353
      %2402 = vst [vmem:[#allocation5 + $0x50] sm:$0xff] %v2354
      %2403 = vst [vmem:[#allocation5 + $0x58] sm:$0xff] %v2355
      %2404 = vst [vmem:[#allocation5 + $0x60] sm:$0xff] %v2356
      %2405 = vst [vmem:[#allocation5 + $0x68] sm:$0xff] %v2357
      %2406 = vst [vmem:[#allocation5 + $0x70] sm:$0xff] %v2358
      %2407 = vst [vmem:[#allocation5 + $0x78] sm:$0xff] %v2359
      %2408 = vst [vmem:[#allocation5 + $0x80] sm:$0xff] %v2360
      %2409 = vst [vmem:[#allocation5 + $0x88] sm:$0xff] %v2361
      %2410 = vst [vmem:[#allocation5 + $0x90] sm:$0xff] %v2362
      %2411 = vst [vmem:[#allocation5 + $0x98] sm:$0xff] %v2363
      %2412 = vst [vmem:[#allocation5 + $0xa0] sm:$0xff] %v2364
      %2413 = vst [vmem:[#allocation5 + $0xa8] sm:$0xff] %v2365
      %2414 = vst [vmem:[#allocation5 + $0xb0] sm:$0xff] %v2366
      %2415 = vst [vmem:[#allocation5 + $0xb8] sm:$0xff] %v2367
      %2416 = vst [vmem:[#allocation5 + $0xc0] sm:$0xff] %v2368
      %2417 = vst [vmem:[#allocation5 + $0xc8] sm:$0xff] %v2369
      %2418 = vst [vmem:[#allocation5 + $0xd0] sm:$0xff] %v2370
      %2419 = vst [vmem:[#allocation5 + $0xd8] sm:$0xff] %v2371
      %2420 = vst [vmem:[#allocation5 + $0xe0] sm:$0xff] %v2372
      %2421 = vst [vmem:[#allocation5 + $0xe8] sm:$0xff] %v2373
      %2422 = vst [vmem:[#allocation5 + $0xf0] sm:$0xff] %v2374
      %2423 = vst [vmem:[#allocation5 + $0xf8] sm:$0xff] %v2375
      %2424 = vst [vmem:[#allocation5 + $0x100] sm:$0xff] %v2376
      %2425 = vst [vmem:[#allocation5 + $0x108] sm:$0xff] %v2377
      %2426 = vst [vmem:[#allocation5 + $0x110] sm:$0xff] %v2378
      %2427 = vst [vmem:[#allocation5 + $0x118] sm:$0xff] %v2379
      %2428 = vst [vmem:[#allocation5 + $0x120] sm:$0xff] %v2380
      %2429 = vst [vmem:[#allocation5 + $0x128] sm:$0xff] %v2381
      %2430 = vst [vmem:[#allocation5 + $0x130] sm:$0xff] %v2382
      %2431 = vst [vmem:[#allocation5 + $0x138] sm:$0xff] %v2383
      %2432 = vst [vmem:[#allocation5 + $0x140] sm:$0xff] %v2384
      %2433 = vst [vmem:[#allocation5 + $0x148] sm:$0xff] %v2385
      %2434 = vst [vmem:[#allocation5 + $0x150] sm:$0xff] %v2386
      %2435 = vst [vmem:[#allocation5 + $0x158] sm:$0xff] %v2387
      %2436 = vst [vmem:[#allocation5 + $0x160] sm:$0xff] %v2388
      %2437 = vst [vmem:[#allocation5 + $0x168] sm:$0xff] %v2389
      %2438 = vst [vmem:[#allocation5 + $0x170] sm:$0xff] %v2390
      %2439 = vst [vmem:[#allocation5 + $0x178] sm:$0xff] %v2391
    $region29: #{tpu_custom_call.1} parent=1 // pred_fallthru
      _
    // Predicated region
    $region30: #{tpu_custom_call.1} parent=1 // pred_check
      %p2440 = pneg %p2240
    $region31: #{tpu_custom_call.1} parent=1 // pred_check_branch
      %2442 = sbr.rel (%p2440) target = $region33
    $region32: #{tpu_custom_call.1} parent=1 // pred_region
      %v2443 = vld [vmem:[#allocation5] sm:$0xff]
      %v2444 = vld [vmem:[#allocation5 + $0x8] sm:$0xff]
      %v2445 = vld [vmem:[#allocation5 + $0x10] sm:$0xff]
      %v2446 = vld [vmem:[#allocation5 + $0x18] sm:$0xff]
      %v2447 = vld [vmem:[#allocation5 + $0x20] sm:$0xff]
      %v2448 = vld [vmem:[#allocation5 + $0x28] sm:$0xff]
      %v2449 = vld [vmem:[#allocation5 + $0x30] sm:$0xff]
      %v2450 = vld [vmem:[#allocation5 + $0x38] sm:$0xff]
      %v2451 = vld [vmem:[#allocation5 + $0x40] sm:$0xff]
      %v2452 = vld [vmem:[#allocation5 + $0x48] sm:$0xff]
      %v2453 = vld [vmem:[#allocation5 + $0x50] sm:$0xff]
      %v2454 = vld [vmem:[#allocation5 + $0x58] sm:$0xff]
      %v2455 = vld [vmem:[#allocation5 + $0x60] sm:$0xff]
      %v2456 = vld [vmem:[#allocation5 + $0x68] sm:$0xff]
      %v2457 = vld [vmem:[#allocation5 + $0x70] sm:$0xff]
      %v2458 = vld [vmem:[#allocation5 + $0x78] sm:$0xff]
      %v2459 = vld [vmem:[#allocation5 + $0x80] sm:$0xff]
      %v2460 = vld [vmem:[#allocation5 + $0x88] sm:$0xff]
      %v2461 = vld [vmem:[#allocation5 + $0x90] sm:$0xff]
      %v2462 = vld [vmem:[#allocation5 + $0x98] sm:$0xff]
      %v2463 = vld [vmem:[#allocation5 + $0xa0] sm:$0xff]
      %v2464 = vld [vmem:[#allocation5 + $0xa8] sm:$0xff]
      %v2465 = vld [vmem:[#allocation5 + $0xb0] sm:$0xff]
      %v2466 = vld [vmem:[#allocation5 + $0xb8] sm:$0xff]
      %v2467 = vld [vmem:[#allocation5 + $0xc0] sm:$0xff]
      %v2468 = vld [vmem:[#allocation5 + $0xc8] sm:$0xff]
      %v2469 = vld [vmem:[#allocation5 + $0xd0] sm:$0xff]
      %v2470 = vld [vmem:[#allocation5 + $0xd8] sm:$0xff]
      %v2471 = vld [vmem:[#allocation5 + $0xe0] sm:$0xff]
      %v2472 = vld [vmem:[#allocation5 + $0xe8] sm:$0xff]
      %v2473 = vld [vmem:[#allocation5 + $0xf0] sm:$0xff]
      %v2474 = vld [vmem:[#allocation5 + $0xf8] sm:$0xff]
      %v2475 = vld [vmem:[#allocation5 + $0x100] sm:$0xff]
      %v2476 = vld [vmem:[#allocation5 + $0x108] sm:$0xff]
      %v2477 = vld [vmem:[#allocation5 + $0x110] sm:$0xff]
      %v2478 = vld [vmem:[#allocation5 + $0x118] sm:$0xff]
      %v2479 = vld [vmem:[#allocation5 + $0x120] sm:$0xff]
      %v2480 = vld [vmem:[#allocation5 + $0x128] sm:$0xff]
      %v2481 = vld [vmem:[#allocation5 + $0x130] sm:$0xff]
      %v2482 = vld [vmem:[#allocation5 + $0x138] sm:$0xff]
      %v2483 = vld [vmem:[#allocation5 + $0x140] sm:$0xff]
      %v2484 = vld [vmem:[#allocation5 + $0x148] sm:$0xff]
      %v2485 = vld [vmem:[#allocation5 + $0x150] sm:$0xff]
      %v2486 = vld [vmem:[#allocation5 + $0x158] sm:$0xff]
      %v2487 = vld [vmem:[#allocation5 + $0x160] sm:$0xff]
      %v2488 = vld [vmem:[#allocation5 + $0x168] sm:$0xff]
      %v2489 = vld [vmem:[#allocation5 + $0x170] sm:$0xff]
      %v2490 = vld [vmem:[#allocation5 + $0x178] sm:$0xff]
      %v2491 = vrcp.pop %v2443
      %v2492 = vrcp.pop %v2444
      %v2493 = vrcp.pop %v2445
      %v2494 = vrcp.pop %v2446
      %v2495 = vrcp.pop %v2447
      %v2496 = vrcp.pop %v2448
      %v2497 = vrcp.pop %v2449
      %v2498 = vrcp.pop %v2450
      %v2499 = vrcp.pop %v2451
      %v2500 = vrcp.pop %v2452
      %v2501 = vrcp.pop %v2453
      %v2502 = vrcp.pop %v2454
      %v2503 = vrcp.pop %v2455
      %v2504 = vrcp.pop %v2456
      %v2505 = vrcp.pop %v2457
      %v2506 = vrcp.pop %v2458
      %v2507 = vrcp.pop %v2459
      %v2508 = vrcp.pop %v2460
      %v2509 = vrcp.pop %v2461
      %v2510 = vrcp.pop %v2462
      %v2511 = vrcp.pop %v2463
      %v2512 = vrcp.pop %v2464
      %v2513 = vrcp.pop %v2465
      %v2514 = vrcp.pop %v2466
      %v2515 = vrcp.pop %v2467
      %v2516 = vrcp.pop %v2468
      %v2517 = vrcp.pop %v2469
      %v2518 = vrcp.pop %v2470
      %v2519 = vrcp.pop %v2471
      %v2520 = vrcp.pop %v2472
      %v2521 = vrcp.pop %v2473
      %v2522 = vrcp.pop %v2474
      %v2523 = vrcp.pop %v2475
      %v2524 = vrcp.pop %v2476
      %v2525 = vrcp.pop %v2477
      %v2526 = vrcp.pop %v2478
      %v2527 = vrcp.pop %v2479
      %v2528 = vrcp.pop %v2480
      %v2529 = vrcp.pop %v2481
      %v2530 = vrcp.pop %v2482
      %v2531 = vrcp.pop %v2483
      %v2532 = vrcp.pop %v2484
      %v2533 = vrcp.pop %v2485
      %v2534 = vrcp.pop %v2486
      %v2535 = vrcp.pop %v2487
      %v2536 = vrcp.pop %v2488
      %v2537 = vrcp.pop %v2489
      %v2538 = vrcp.pop %v2490
      %2540 = vset.pattern.permute.xlu0 8
      %2541 = vperm.xlu0 %2540, %v2491
      %v2542 = vpop.permute.xlu0 %2541
      %2545 = vset.pattern.permute.xlu0 8
      %2546 = vperm.xlu0 %2545, %v2492
      %v2547 = vpop.permute.xlu0 %2546
      %2550 = vset.pattern.permute.xlu0 8
      %2551 = vperm.xlu0 %2550, %v2493
      %v2552 = vpop.permute.xlu0 %2551
      %2555 = vset.pattern.permute.xlu0 8
      %2556 = vperm.xlu0 %2555, %v2494
      %v2557 = vpop.permute.xlu0 %2556
      %2560 = vset.pattern.permute.xlu0 8
      %2561 = vperm.xlu0 %2560, %v2495
      %v2562 = vpop.permute.xlu0 %2561
      %2565 = vset.pattern.permute.xlu0 8
      %2566 = vperm.xlu0 %2565, %v2496
      %v2567 = vpop.permute.xlu0 %2566
      %2570 = vset.pattern.permute.xlu0 8
      %2571 = vperm.xlu0 %2570, %v2497
      %v2572 = vpop.permute.xlu0 %2571
      %2575 = vset.pattern.permute.xlu0 8
      %2576 = vperm.xlu0 %2575, %v2498
      %v2577 = vpop.permute.xlu0 %2576
      %2580 = vset.pattern.permute.xlu0 8
      %2581 = vperm.xlu0 %2580, %v2499
      %v2582 = vpop.permute.xlu0 %2581
      %2585 = vset.pattern.permute.xlu0 8
      %2586 = vperm.xlu0 %2585, %v2500
      %v2587 = vpop.permute.xlu0 %2586
      %2590 = vset.pattern.permute.xlu0 8
      %2591 = vperm.xlu0 %2590, %v2501
      %v2592 = vpop.permute.xlu0 %2591
      %2595 = vset.pattern.permute.xlu0 8
      %2596 = vperm.xlu0 %2595, %v2502
      %v2597 = vpop.permute.xlu0 %2596
      %2600 = vset.pattern.permute.xlu0 8
      %2601 = vperm.xlu0 %2600, %v2503
      %v2602 = vpop.permute.xlu0 %2601
      %2605 = vset.pattern.permute.xlu0 8
      %2606 = vperm.xlu0 %2605, %v2504
      %v2607 = vpop.permute.xlu0 %2606
      %2610 = vset.pattern.permute.xlu0 8
      %2611 = vperm.xlu0 %2610, %v2505
      %v2612 = vpop.permute.xlu0 %2611
      %2615 = vset.pattern.permute.xlu0 8
      %2616 = vperm.xlu0 %2615, %v2506
      %v2617 = vpop.permute.xlu0 %2616
      %2620 = vset.pattern.permute.xlu0 8
      %2621 = vperm.xlu0 %2620, %v2507
      %v2622 = vpop.permute.xlu0 %2621
      %2625 = vset.pattern.permute.xlu0 8
      %2626 = vperm.xlu0 %2625, %v2508
      %v2627 = vpop.permute.xlu0 %2626
      %2630 = vset.pattern.permute.xlu0 8
      %2631 = vperm.xlu0 %2630, %v2509
      %v2632 = vpop.permute.xlu0 %2631
      %2635 = vset.pattern.permute.xlu0 8
      %2636 = vperm.xlu0 %2635, %v2510
      %v2637 = vpop.permute.xlu0 %2636
      %2640 = vset.pattern.permute.xlu0 8
      %2641 = vperm.xlu0 %2640, %v2511
      %v2642 = vpop.permute.xlu0 %2641
      %2645 = vset.pattern.permute.xlu0 8
      %2646 = vperm.xlu0 %2645, %v2512
      %v2647 = vpop.permute.xlu0 %2646
      %2650 = vset.pattern.permute.xlu0 8
      %2651 = vperm.xlu0 %2650, %v2513
      %v2652 = vpop.permute.xlu0 %2651
      %2655 = vset.pattern.permute.xlu0 8
      %2656 = vperm.xlu0 %2655, %v2514
      %v2657 = vpop.permute.xlu0 %2656
      %2660 = vset.pattern.permute.xlu0 8
      %2661 = vperm.xlu0 %2660, %v2515
      %v2662 = vpop.permute.xlu0 %2661
      %2665 = vset.pattern.permute.xlu0 8
      %2666 = vperm.xlu0 %2665, %v2516
      %v2667 = vpop.permute.xlu0 %2666
      %2670 = vset.pattern.permute.xlu0 8
      %2671 = vperm.xlu0 %2670, %v2517
      %v2672 = vpop.permute.xlu0 %2671
      %2675 = vset.pattern.permute.xlu0 8
      %2676 = vperm.xlu0 %2675, %v2518
      %v2677 = vpop.permute.xlu0 %2676
      %2680 = vset.pattern.permute.xlu0 8
      %2681 = vperm.xlu0 %2680, %v2519
      %v2682 = vpop.permute.xlu0 %2681
      %2685 = vset.pattern.permute.xlu0 8
      %2686 = vperm.xlu0 %2685, %v2520
      %v2687 = vpop.permute.xlu0 %2686
      %2690 = vset.pattern.permute.xlu0 8
      %2691 = vperm.xlu0 %2690, %v2521
      %v2692 = vpop.permute.xlu0 %2691
      %2695 = vset.pattern.permute.xlu0 8
      %2696 = vperm.xlu0 %2695, %v2522
      %v2697 = vpop.permute.xlu0 %2696
      %2700 = vset.pattern.permute.xlu0 8
      %2701 = vperm.xlu0 %2700, %v2523
      %v2702 = vpop.permute.xlu0 %2701
      %2705 = vset.pattern.permute.xlu0 8
      %2706 = vperm.xlu0 %2705, %v2524
      %v2707 = vpop.permute.xlu0 %2706
      %2710 = vset.pattern.permute.xlu0 8
      %2711 = vperm.xlu0 %2710, %v2525
      %v2712 = vpop.permute.xlu0 %2711
      %2715 = vset.pattern.permute.xlu0 8
      %2716 = vperm.xlu0 %2715, %v2526
      %v2717 = vpop.permute.xlu0 %2716
      %2720 = vset.pattern.permute.xlu0 8
      %2721 = vperm.xlu0 %2720, %v2527
      %v2722 = vpop.permute.xlu0 %2721
      %2725 = vset.pattern.permute.xlu0 8
      %2726 = vperm.xlu0 %2725, %v2528
      %v2727 = vpop.permute.xlu0 %2726
      %2730 = vset.pattern.permute.xlu0 8
      %2731 = vperm.xlu0 %2730, %v2529
      %v2732 = vpop.permute.xlu0 %2731
      %2735 = vset.pattern.permute.xlu0 8
      %2736 = vperm.xlu0 %2735, %v2530
      %v2737 = vpop.permute.xlu0 %2736
      %2740 = vset.pattern.permute.xlu0 8
      %2741 = vperm.xlu0 %2740, %v2531
      %v2742 = vpop.permute.xlu0 %2741
      %2745 = vset.pattern.permute.xlu0 8
      %2746 = vperm.xlu0 %2745, %v2532
      %v2747 = vpop.permute.xlu0 %2746
      %2750 = vset.pattern.permute.xlu0 8
      %2751 = vperm.xlu0 %2750, %v2533
      %v2752 = vpop.permute.xlu0 %2751
      %2755 = vset.pattern.permute.xlu0 8
      %2756 = vperm.xlu0 %2755, %v2534
      %v2757 = vpop.permute.xlu0 %2756
      %2760 = vset.pattern.permute.xlu0 8
      %2761 = vperm.xlu0 %2760, %v2535
      %v2762 = vpop.permute.xlu0 %2761
      %2765 = vset.pattern.permute.xlu0 8
      %2766 = vperm.xlu0 %2765, %v2536
      %v2767 = vpop.permute.xlu0 %2766
      %2770 = vset.pattern.permute.xlu0 8
      %2771 = vperm.xlu0 %2770, %v2537
      %v2772 = vpop.permute.xlu0 %2771
      %2775 = vset.pattern.permute.xlu0 8
      %2776 = vperm.xlu0 %2775, %v2538
      %v2777 = vpop.permute.xlu0 %2776
      %v2779 = vmul.f32 %v2443, %v2542
      %v2780 = vmul.f32 %v2444, %v2547
      %v2781 = vmul.f32 %v2445, %v2552
      %v2782 = vmul.f32 %v2446, %v2557
      %v2783 = vmul.f32 %v2447, %v2562
      %v2784 = vmul.f32 %v2448, %v2567
      %v2785 = vmul.f32 %v2449, %v2572
      %v2786 = vmul.f32 %v2450, %v2577
      %v2787 = vmul.f32 %v2451, %v2582
      %v2788 = vmul.f32 %v2452, %v2587
      %v2789 = vmul.f32 %v2453, %v2592
      %v2790 = vmul.f32 %v2454, %v2597
      %v2791 = vmul.f32 %v2455, %v2602
      %v2792 = vmul.f32 %v2456, %v2607
      %v2793 = vmul.f32 %v2457, %v2612
      %v2794 = vmul.f32 %v2458, %v2617
      %v2795 = vmul.f32 %v2459, %v2622
      %v2796 = vmul.f32 %v2460, %v2627
      %v2797 = vmul.f32 %v2461, %v2632
      %v2798 = vmul.f32 %v2462, %v2637
      %v2799 = vmul.f32 %v2463, %v2642
      %v2800 = vmul.f32 %v2464, %v2647
      %v2801 = vmul.f32 %v2465, %v2652
      %v2802 = vmul.f32 %v2466, %v2657
      %v2803 = vmul.f32 %v2467, %v2662
      %v2804 = vmul.f32 %v2468, %v2667
      %v2805 = vmul.f32 %v2469, %v2672
      %v2806 = vmul.f32 %v2470, %v2677
      %v2807 = vmul.f32 %v2471, %v2682
      %v2808 = vmul.f32 %v2472, %v2687
      %v2809 = vmul.f32 %v2473, %v2692
      %v2810 = vmul.f32 %v2474, %v2697
      %v2811 = vmul.f32 %v2475, %v2702
      %v2812 = vmul.f32 %v2476, %v2707
      %v2813 = vmul.f32 %v2477, %v2712
      %v2814 = vmul.f32 %v2478, %v2717
      %v2815 = vmul.f32 %v2479, %v2722
      %v2816 = vmul.f32 %v2480, %v2727
      %v2817 = vmul.f32 %v2481, %v2732
      %v2818 = vmul.f32 %v2482, %v2737
      %v2819 = vmul.f32 %v2483, %v2742
      %v2820 = vmul.f32 %v2484, %v2747
      %v2821 = vmul.f32 %v2485, %v2752
      %v2822 = vmul.f32 %v2486, %v2757
      %v2823 = vmul.f32 %v2487, %v2762
      %v2824 = vmul.f32 %v2488, %v2767
      %v2825 = vmul.f32 %v2489, %v2772
      %v2826 = vmul.f32 %v2490, %v2777
      %2827 = vst [vmem:[#allocation5] sm:$0xff] %v2779
      %2828 = vst [vmem:[#allocation5 + $0x8] sm:$0xff] %v2780
      %2829 = vst [vmem:[#allocation5 + $0x10] sm:$0xff] %v2781
      %2830 = vst [vmem:[#allocation5 + $0x18] sm:$0xff] %v2782
      %2831 = vst [vmem:[#allocation5 + $0x20] sm:$0xff] %v2783
      %2832 = vst [vmem:[#allocation5 + $0x28] sm:$0xff] %v2784
      %2833 = vst [vmem:[#allocation5 + $0x30] sm:$0xff] %v2785
      %2834 = vst [vmem:[#allocation5 + $0x38] sm:$0xff] %v2786
      %2835 = vst [vmem:[#allocation5 + $0x40] sm:$0xff] %v2787
      %2836 = vst [vmem:[#allocation5 + $0x48] sm:$0xff] %v2788
      %2837 = vst [vmem:[#allocation5 + $0x50] sm:$0xff] %v2789
      %2838 = vst [vmem:[#allocation5 + $0x58] sm:$0xff] %v2790
      %2839 = vst [vmem:[#allocation5 + $0x60] sm:$0xff] %v2791
      %2840 = vst [vmem:[#allocation5 + $0x68] sm:$0xff] %v2792
      %2841 = vst [vmem:[#allocation5 + $0x70] sm:$0xff] %v2793
      %2842 = vst [vmem:[#allocation5 + $0x78] sm:$0xff] %v2794
      %2843 = vst [vmem:[#allocation5 + $0x80] sm:$0xff] %v2795
      %2844 = vst [vmem:[#allocation5 + $0x88] sm:$0xff] %v2796
      %2845 = vst [vmem:[#allocation5 + $0x90] sm:$0xff] %v2797
      %2846 = vst [vmem:[#allocation5 + $0x98] sm:$0xff] %v2798
      %2847 = vst [vmem:[#allocation5 + $0xa0] sm:$0xff] %v2799
      %2848 = vst [vmem:[#allocation5 + $0xa8] sm:$0xff] %v2800
      %2849 = vst [vmem:[#allocation5 + $0xb0] sm:$0xff] %v2801
      %2850 = vst [vmem:[#allocation5 + $0xb8] sm:$0xff] %v2802
      %2851 = vst [vmem:[#allocation5 + $0xc0] sm:$0xff] %v2803
      %2852 = vst [vmem:[#allocation5 + $0xc8] sm:$0xff] %v2804
      %2853 = vst [vmem:[#allocation5 + $0xd0] sm:$0xff] %v2805
      %2854 = vst [vmem:[#allocation5 + $0xd8] sm:$0xff] %v2806
      %2855 = vst [vmem:[#allocation5 + $0xe0] sm:$0xff] %v2807
      %2856 = vst [vmem:[#allocation5 + $0xe8] sm:$0xff] %v2808
      %2857 = vst [vmem:[#allocation5 + $0xf0] sm:$0xff] %v2809
      %2858 = vst [vmem:[#allocation5 + $0xf8] sm:$0xff] %v2810
      %2859 = vst [vmem:[#allocation5 + $0x100] sm:$0xff] %v2811
      %2860 = vst [vmem:[#allocation5 + $0x108] sm:$0xff] %v2812
      %2861 = vst [vmem:[#allocation5 + $0x110] sm:$0xff] %v2813
      %2862 = vst [vmem:[#allocation5 + $0x118] sm:$0xff] %v2814
      %2863 = vst [vmem:[#allocation5 + $0x120] sm:$0xff] %v2815
      %2864 = vst [vmem:[#allocation5 + $0x128] sm:$0xff] %v2816
      %2865 = vst [vmem:[#allocation5 + $0x130] sm:$0xff] %v2817
      %2866 = vst [vmem:[#allocation5 + $0x138] sm:$0xff] %v2818
      %2867 = vst [vmem:[#allocation5 + $0x140] sm:$0xff] %v2819
      %2868 = vst [vmem:[#allocation5 + $0x148] sm:$0xff] %v2820
      %2869 = vst [vmem:[#allocation5 + $0x150] sm:$0xff] %v2821
      %2870 = vst [vmem:[#allocation5 + $0x158] sm:$0xff] %v2822
      %2871 = vst [vmem:[#allocation5 + $0x160] sm:$0xff] %v2823
      %2872 = vst [vmem:[#allocation5 + $0x168] sm:$0xff] %v2824
      %2873 = vst [vmem:[#allocation5 + $0x170] sm:$0xff] %v2825
      %2874 = vst [vmem:[#allocation5 + $0x178] sm:$0xff] %v2826
    $region33: #{tpu_custom_call.1} parent=1 // pred_fallthru
      _
    // Predicated region
    $region34: #{tpu_custom_call.1} parent=1 // pred_check
      _
    $region35: #{tpu_custom_call.1} parent=1 // pred_check_branch
      %2876 = sbr.rel (0) target = $region37
    $region36: #{tpu_custom_call.1} parent=1 // pred_region
      %s2878 = ssub.s32 6144, 6144
      %2879 = vsyncadd [#allocation4], %s2878
      %s2880 = sshll.u32 [#allocation5], 4
      %s2881 = int_to_ptr.vmem [resolvable:$true] %s2880
      %2886 = dma.vmem_to_hbm [thread:$0]  %s2881, 6144, %s4, [#allocation4], 128, 128, 8
    $region37: #{tpu_custom_call.1} parent=1 // pred_fallthru
      _
    // Predicated region
    $region38: #{tpu_custom_call.1} parent=1 // pred_check
      _
    $region39: #{tpu_custom_call.1} parent=1 // pred_check_branch
      %2888 = sbr.rel (0) target = $region41
    $region40: #{tpu_custom_call.1} parent=1 // pred_region
      %2889 = dma.done [#allocation4], 6144
    $region41: #{tpu_custom_call.1} parent=1 // pred_fallthru
      _
    %2890 = vsyncpa [#allocation3], 1
    %2891 = vsyncpa [#allocation4], 1

</llo_original>
